<compile_context>
chip_gen: v7x
topology: tpu7x:2x2x1
jax: 0.10.0
libtpu: 0.0.40
codegen_flags: <defaults>
</compile_context>

<pallas_src>
import functools

import jax
import jax.numpy as jnp
from jax.experimental import pallas as pl
from jax.experimental.pallas import tpu as pltpu

F32 = jnp.float32
BF16 = jnp.bfloat16


# ----------------------------------------------------------------------------
# small helpers
# ----------------------------------------------------------------------------
def _layernorm(x, g, b, eps=1e-5):
    mu = jnp.mean(x, axis=-1, keepdims=True)
    var = jnp.mean(jnp.square(x - mu), axis=-1, keepdims=True)
    return (x - mu) * jax.lax.rsqrt(var + eps) * g + b


def _erf_approx(x):
    # Abramowitz & Stegun 7.1.26 (|abs err| <= 1.5e-7); matches torch's exact GELU.
    a1, a2, a3, a4, a5 = 0.254829592, -0.284496736, 1.421413741, -1.453152027, 1.061405429
    pc = 0.3275911
    ax = jnp.abs(x)
    t = 1.0 / (1.0 + pc * ax)
    poly = ((((a5 * t + a4) * t + a3) * t + a2) * t + a1) * t
    y = 1.0 - poly * jnp.exp(-ax * ax)
    return jnp.where(x >= 0, y, -y)


def _gelu_exact(x):
    return 0.5 * x * (1.0 + _erf_approx(x * 0.7071067811865476))


def _pick_tile(n, max_tile, mult=8):
    """Largest tile <= max_tile that evenly divides n (multiple of `mult`).
    Falls back to n itself (full extent, always legal as a block dim)."""
    if n <= max_tile:
        return n
    for t in range(max_tile, mult - 1, -1):
        if n % t == 0 and t % mult == 0:
            return t
    return n   # TODO(synk): pad path for awkward n (can be VMEM-heavy).


def _vmem_limit_bytes():
    # Scoped-VMEM defaults are only 16 MiB (v5e) / 32 MiB (v6e, v7x); raise it.
    try:
        cap = int(pltpu.get_tpu_info().vmem_capacity_bytes)
        if cap >= (32 << 20):
            return int(cap * 3 // 4)     # ~96 MiB on v5e/v6e, ~48 MiB on v7x
    except Exception:
        pass
    return 48 << 20


# ----------------------------------------------------------------------------
# Pallas kernel 1: per-pixel fused  dual 1x1conv + BN(eval) + ReLU
#                  (+ img_embed on the K branch) + LayerNorm + W_k / W_v
#   -> kh, vh emitted head-major, bf16, once per pixel (hoisted out of the
#      attention loop; previously this was redone for every q tile).
# ----------------------------------------------------------------------------
def _kv_project_kernel(x_ref, emb_ref, wc_ref, tc_ref, lng_ref, lnb_ref,
                       wk_ref, bk_ref, wv_ref, bv_ref, kh_ref, vh_ref,
                       *, hid, heads):
    # fused conv (both branches share one (C, 2*hid) matmul), BN folded in.
    y = jnp.dot(x_ref[...].astype(BF16), wc_ref[...],
                preferred_element_type=F32) + tc_ref[...]
    y = jnp.maximum(y, 0.0)
    k_pre = y[:, :hid] + emb_ref[...]            # + img_embed (K branch only)
    v_pre = y[:, hid:]
    lng = lng_ref[...]
    lnb = lnb_ref[...]
    kn = _layernorm(k_pre, lng[0:1], lnb[0:1]).astype(BF16)
    vn = _layernorm(v_pre, lng[1:2], lnb[1:2]).astype(BF16)
    for m in range(heads):                       # head-major outputs
        kh_ref[m] = (jnp.dot(kn, wk_ref[m], preferred_element_type=F32)
                     + bk_ref[m]).astype(BF16)
        vh_ref[m] = (jnp.dot(vn, wv_ref[m], preferred_element_type=F32)
                     + bv_ref[m]).astype(BF16)


def fused_kv_project(x_cam, emb_cam, params, heads, dim_head,
                     eps=1e-5, max_tile=2048):
    """x_cam: (B*N, K, C) channels-last pixel tokens; emb_cam: (B*N, K, hid).
    Returns kh, vh: (B*N, heads, K, dim_head) bf16."""
    BN, K, C = x_cam.shape
    hid = params["proj_w"].shape[0]
    dh = dim_head
    ca = params["ca"]

    # fold BN (eval) scale/shift into one fused (C, 2*hid) conv weight.
    inv_p = params["proj_bn"]["gamma"] / jnp.sqrt(params["proj_bn"]["var"] + eps)
    inv_l = params["linear_bn"]["gamma"] / jnp.sqrt(params["linear_bn"]["var"] + eps)
    wc = jnp.concatenate([params["proj_w"] * inv_p[:, None],
                          params["linear_w"] * inv_l[:, None]], axis=0).T.astype(BF16)
    tc = jnp.concatenate(
        [params["proj_bn"]["beta"] - params["proj_bn"]["mean"] * inv_p,
         params["linear_bn"]["beta"] - params["linear_bn"]["mean"] * inv_l]
    ).reshape(1, 2 * hid)

    lng = jnp.stack([ca["ln_k_g"], ca["ln_v_g"]])            # (2, hid)
    lnb = jnp.stack([ca["ln_k_b"], ca["ln_v_b"]])
    # torch Linear weights (heads*dh, hid) -> head-major (heads, hid, dh).
    wk = ca["W_k"].reshape(heads, dh, hid).transpose(0, 2, 1).astype(BF16)
    wv = ca["W_v"].reshape(heads, dh, hid).transpose(0, 2, 1).astype(BF16)
    bk = ca["b_k"].reshape(heads, 1, dh)
    bv = ca["b_v"].reshape(heads, 1, dh)

    tile = _pick_tile(K, max_tile, mult=16)
    kern = functools.partial(_kv_project_kernel, hid=hid, heads=heads)
    const2 = lambda c, t: (0, 0)
    const3 = lambda c, t: (0, 0, 0)
    kh, vh = pl.pallas_call(
        kern,
        out_shape=(jax.ShapeDtypeStruct((BN, heads, K, dh), BF16),
                   jax.ShapeDtypeStruct((BN, heads, K, dh), BF16)),
        grid=(BN, K // tile),
        in_specs=[
            pl.BlockSpec((None, tile, C), lambda c, t: (c, t, 0)),
            pl.BlockSpec((None, tile, hid), lambda c, t: (c, t, 0)),
            pl.BlockSpec((C, 2 * hid), const2),
            pl.BlockSpec((1, 2 * hid), const2),
            pl.BlockSpec((2, hid), const2),
            pl.BlockSpec((2, hid), const2),
            pl.BlockSpec((heads, hid, dh), const3),
            pl.BlockSpec((heads, 1, dh), const3),
            pl.BlockSpec((heads, hid, dh), const3),
            pl.BlockSpec((heads, 1, dh), const3),
        ],
        out_specs=(pl.BlockSpec((None, heads, tile, dh), lambda c, t: (c, 0, t, 0)),
                   pl.BlockSpec((None, heads, tile, dh), lambda c, t: (c, 0, t, 0))),
        compiler_params=pltpu.CompilerParams(
            dimension_semantics=("parallel", "parallel"),
            vmem_limit_bytes=_vmem_limit_bytes()),
    )(x_cam, emb_cam, wc, tc, lng, lnb, wk, bk, wv, bv)
    return kh, vh


def conv_bn_relu_ref(x_tok, w, bn, eps=1e-5):
    y = x_tok @ w.T
    inv = bn["gamma"] / jnp.sqrt(bn["var"] + eps)
    y = y * inv + (bn["beta"] - bn["mean"] * inv)
    return jnp.maximum(y, 0.0)


# ----------------------------------------------------------------------------
# Pallas kernel 2: flash-style multi-camera cross attention
#   grid = (batch, q_tile, camera*k_tile); the last axis is the softmax
#   reduction ("arbitrary") with online-softmax m/l/acc scratch.  Q LayerNorm
#   + projection (scale folded in) is recomputed only when the camera changes.
#   All MXU operands bf16, f32 accumulation; softmax statistics f32.
# ----------------------------------------------------------------------------
def _flash_attn_kernel(q_ref, k_ref, v_ref, lng_ref, lnb_ref, wq_ref, bq_ref,
                       o_ref, qh_sc, m_sc, l_sc, acc_sc, *, heads, n_k_tiles):
    nk = pl.program_id(2)

    @pl.when(nk == 0)
    def _init():
        m_sc[...] = jnp.full(m_sc.shape, -jnp.inf, dtype=F32)
        l_sc[...] = jnp.zeros(l_sc.shape, dtype=F32)
        acc_sc[...] = jnp.zeros(acc_sc.shape, dtype=F32)

    # Re-project Q only when its (camera-dependent) block changes.
    @pl.when(nk % n_k_tiles == 0)
    def _project_q():
        qn = _layernorm(q_ref[...], lng_ref[...], lnb_ref[...]).astype(BF16)
        for m in range(heads):
            qh_sc[m] = (jnp.dot(qn, wq_ref[m], preferred_element_type=F32)
                        + bq_ref[m]).astype(BF16)

    qh = qh_sc[...]                                       # (heads, TQ, dh) bf16
    kh = k_ref[...]                                       # (heads, TK, dh) bf16
    vh = v_ref[...]
    # head-batched QK^T and PV (leading batch dim = heads, no lane slicing).
    s = jax.lax.dot_general(qh, kh, (((2,), (2,)), ((0,), (0,))),
                            preferred_element_type=F32)   # (heads, TQ, TK)
    m_prev = m_sc[...]
    m_new = jnp.maximum(m_prev, jnp.max(s, axis=-1, keepdims=True))
    alpha = jnp.exp(m_prev - m_new)
    p = jnp.exp(s - m_new)
    l_sc[...] = alpha * l_sc[...] + jnp.sum(p, axis=-1, keepdims=True)
    pv = jax.lax.dot_general(p.astype(BF16), vh, (((2,), (1,)), ((0,), (0,))),
                             preferred_element_type=F32)  # (heads, TQ, dh)
    acc_sc[...] = alpha * acc_sc[...] + pv
    m_sc[...] = m_new

    @pl.when(nk == pl.num_programs(2) - 1)
    def _finish():
        o_ref[...] = (acc_sc[...] *
                      pl.reciprocal(l_sc[...], approx=False)).astype(o_ref.dtype)


def cross_attention_flash(ca, q4, kh, vh, heads, dim_head, scale,
                          max_q_tile=512, max_k_tile=1024):
    """q4: (B, N, Q, D) f32; kh/vh: (B*N, heads, K, dh) bf16.
    Returns normalized per-head attention output: (B, heads, Q, dh) f32."""
    B, N, Q, D = q4.shape
    _, _, K, dh = kh.shape
    TQ = _pick_tile(Q, max_q_tile, mult=8)
    n_q_tiles = Q // TQ
    TK = _pick_tile(K, max_k_tile, mult=16)
    n_k_tiles = K // TK

    lng = ca["ln_q_g"].reshape(1, D)
    lnb = ca["ln_q_b"].reshape(1, D)
    # attention scale folded into the Q projection; head-major weights.
    wq = (scale * ca["W_q"]).reshape(heads, dh, D).transpose(0, 2, 1).astype(BF16)
    bq = (scale * ca["b_q"]).reshape(heads, 1, dh)

    q_map = lambda b, qi, nk: (b, nk // n_k_tiles, qi, 0)
    kv_map = lambda b, qi, nk: (b * N + nk // n_k_tiles, 0, nk % n_k_tiles, 0)
    const2 = lambda b, qi, nk: (0, 0)
    const3 = lambda b, qi, nk: (0, 0, 0)

    kern = functools.partial(_flash_attn_kernel, heads=heads, n_k_tiles=n_k_tiles)
    a = pl.pallas_call(
        kern,
        out_shape=jax.ShapeDtypeStruct((B, heads, Q, dh), F32),
        grid=(B, n_q_tiles, N * n_k_tiles),
        in_specs=[
            pl.BlockSpec((None, None, TQ, D), q_map),
            pl.BlockSpec((None, heads, TK, dh), kv_map),
            pl.BlockSpec((None, heads, TK, dh), kv_map),
            pl.BlockSpec((1, D), const2),
            pl.BlockSpec((1, D), const2),
            pl.BlockSpec((heads, D, dh), const3),
            pl.BlockSpec((heads, 1, dh), const3),
        ],
        out_specs=pl.BlockSpec((None, heads, TQ, dh),
                               lambda b, qi, nk: (b, 0, qi, 0)),
        scratch_shapes=[
            pltpu.VMEM((heads, TQ, dh), BF16),       # projected Q (per camera)
            pltpu.VMEM((heads, TQ, 1), F32),         # running max
            pltpu.VMEM((heads, TQ, 1), F32),         # running denominator
            pltpu.VMEM((heads, TQ, dh), F32),        # running numerator
        ],
        compiler_params=pltpu.CompilerParams(
            dimension_semantics=("parallel", "parallel", "arbitrary"),
            vmem_limit_bytes=_vmem_limit_bytes()),
    )(q4, kh, vh, lng, lnb, wq, bq)
    return a


# ----------------------------------------------------------------------------
# Pallas kernel 3: epilogue  (output proj + skip + prenorm + MLP + postnorm)
#   split out of the attention kernel so w_o/w1/w2 are not resident during the
#   per-camera reduction; <2% of total FLOPs so kept in f32 for accuracy.
# ----------------------------------------------------------------------------
def _epilogue_kernel(a_ref, skip_ref, wo_ref, bo_ref, nrm_g_ref, nrm_b_ref,
                     w1_ref, b1_ref, w2_ref, b2_ref, o_ref, *, heads):
    a = a_ref[...]                                    # (heads, TT, dh) f32
    z = skip_ref[...] + bo_ref[...]
    for m in range(heads):                            # head-major output proj
        z = z + jnp.dot(a[m], wo_ref[m], preferred_element_type=F32)
    nrm_g = nrm_g_ref[...]
    nrm_b = nrm_b_ref[...]
    z = _layernorm(z, nrm_g[0:1], nrm_b[0:1])                      # prenorm
    h = jnp.dot(z, w1_ref[...], preferred_element_type=F32) + b1_ref[...]
    h = _gelu_exact(h)
    z = z + jnp.dot(h, w2_ref[...], preferred_element_type=F32) + b2_ref[...]
    z = _layernorm(z, nrm_g[1:2], nrm_b[1:2])                      # postnorm
    o_ref[...] = z.astype(o_ref.dtype)


def attention_epilogue(ca, a, skip_tok, heads, dim_head, max_tile=1024):
    """a: (B, heads, Q, dh) f32; skip_tok: (B, Q, D).  Returns (B, Q, D)."""
    B, _, Q, dh = a.shape
    D = skip_tok.shape[-1]
    TT = _pick_tile(Q, max_tile, mult=8)

    wo = ca["W_o"].T.reshape(heads, dh, D)            # head-major (heads, dh, D)
    bo = ca["b_o"].reshape(1, D)
    nrm_g = jnp.stack([ca["pre_g"], ca["post_g"]])
    nrm_b = jnp.stack([ca["pre_b"], ca["post_b"]])
    w1 = ca["W_1"].T
    b1 = ca["b_1"].reshape(1, 2 * D)
    w2 = ca["W_2"].T
    b2 = ca["b_2"].reshape(1, D)

    const2 = lambda b, t: (0, 0)
    const3 = lambda b, t: (0, 0, 0)
    kern = functools.partial(_epilogue_kernel, heads=heads)
    z = pl.pallas_call(
        kern,
        out_shape=jax.ShapeDtypeStruct((B, Q, D), F32),
        grid=(B, Q // TT),
        in_specs=[
            pl.BlockSpec((None, heads, TT, dh), lambda b, t: (b, 0, t, 0)),
            pl.BlockSpec((None, TT, D), lambda b, t: (b, t, 0)),
            pl.BlockSpec((heads, dh, D), const3),
            pl.BlockSpec((1, D), const2),
            pl.BlockSpec((2, D), const2),
            pl.BlockSpec((2, D), const2),
            pl.BlockSpec((D, 2 * D), const2),
            pl.BlockSpec((1, 2 * D), const2),
            pl.BlockSpec((2 * D, D), const2),
            pl.BlockSpec((1, D), const2),
        ],
        out_specs=pl.BlockSpec((None, TT, D), lambda b, t: (b, t, 0)),
        compiler_params=pltpu.CompilerParams(
            dimension_semantics=("parallel", "parallel"),
            vmem_limit_bytes=_vmem_limit_bytes()),
    )(a, skip_tok, wo, bo, nrm_g, nrm_b, w1, b1, w2, b2)
    return z


# ----------------------------------------------------------------------------
# pure-JAX reference of the torch CrossAttention.forward (token layout)
# ----------------------------------------------------------------------------
def cross_attention_ref(ca, q_tok, k_tok, v_tok, skip_tok, heads, dim_head,
                        scale, num_cams):
    B, NQ, D = q_tok.shape
    N = num_cams
    Q = NQ // N
    K = k_tok.shape[1] // N

    def ln(x, g, b, eps=1e-5):
        mu = x.mean(-1, keepdims=True)
        var = ((x - mu) ** 2).mean(-1, keepdims=True)
        return (x - mu) / jnp.sqrt(var + eps) * g + b

    qh = (ln(q_tok, ca["ln_q_g"], ca["ln_q_b"]) @ ca["W_q"].T + ca["b_q"]
          ).reshape(B, N, Q, heads, dim_head)
    kh = (ln(k_tok, ca["ln_k_g"], ca["ln_k_b"]) @ ca["W_k"].T + ca["b_k"]
          ).reshape(B, N, K, heads, dim_head)
    vh = (ln(v_tok, ca["ln_v_g"], ca["ln_v_b"]) @ ca["W_v"].T + ca["b_v"]
          ).reshape(B, N * K, heads, dim_head)
    prob = scale * jnp.einsum("bnqmd,bnkmd->bnqkm", qh, kh)
    prob = jnp.transpose(prob, (0, 2, 1, 3, 4)).reshape(B, Q, N * K, heads)
    att = jax.nn.softmax(prob, axis=-2)
    a = jnp.einsum("bqkm,bkmd->bqmd", att, vh).reshape(B, Q, heads * dim_head)
    z = a @ ca["W_o"].T + ca["b_o"] + skip_tok
    z = ln(z, ca["pre_g"], ca["pre_b"])
    h = jax.nn.gelu(z @ ca["W_1"].T + ca["b_1"], approximate=False)
    z = z + h @ ca["W_2"].T + ca["b_2"]
    z = ln(z, ca["post_g"], ca["post_b"])
    return z


# ----------------------------------------------------------------------------
# CrossViewAttention forward (geometry / embedding glue in plain JAX,
# channels-last token layout everywhere; output converted to NCHW at the end)
# ----------------------------------------------------------------------------
def create_frustum(img_size, feature_size, dbound):
    iH, iW = img_size
    fH, fW = feature_size
    ds = jnp.arange(*dbound, dtype=jnp.float32)
    Dd = ds.shape[0]
    ds = jnp.broadcast_to(ds[:, None, None], (Dd, fH, fW))
    xs = jnp.broadcast_to(jnp.linspace(0.0, iW - 1, fW)[None, None, :], (Dd, fH, fW))
    ys = jnp.broadcast_to(jnp.linspace(0.0, iH - 1, fH)[None, :, None], (Dd, fH, fW))
    return jnp.stack([xs, ys, ds], axis=-1)          # (Dd, fH, fW, 3)


def cross_view_attention_forward(params, frustum, bev_features, img_features,
                                 depth, bev_grid, img_metas, heads, dim_head,
                                 skip=True, use_pallas=True):
    B, N, C, H, W = img_features.shape
    hid = bev_features.shape[1]
    bH, bW = bev_features.shape[-2:]
    K = H * W
    Q = bH * bW

    # --- camera geometry (eval mode: training-only pcd_* aug skipped) ---
    cam_trans_list, frustum_list = [], []
    for i in range(B):
        meta = img_metas[i]
        img_trans = meta["img_translation"]                            # (N, 3)
        img_scale = meta["img_scale"]                                  # (N,)
        points = frustum[None] + img_trans[:, None, None, None, :]     # (N,Dd,H,W,3)
        xy = points[..., :2] / img_scale[:, None, None, None, None]
        d = points[..., 2:]
        pts4 = jnp.concatenate([xy * d, d, jnp.ones_like(d)], axis=-1)
        img2lidar = jnp.linalg.inv(meta["lidar2img"])                  # (N,4,4)
        cam_trans_list.append(img2lidar[:, :, -1])                     # (N, 4)
        pts = jnp.einsum("nij,ndhwj->ndhwi", img2lidar, pts4)[..., :3]
        frustum_list.append(pts)
    cam_trans = jnp.concatenate(cam_trans_list, axis=0)                # (B*N, 4)
    frustums = jnp.stack(frustum_list, axis=0)                         # (B,N,Dd,H,W,3)
    frustums = (depth[..., None] * frustums).sum(axis=2)               # (B,N,H,W,3)

    # --- embeddings, computed directly channels-last (1x1 conv == matmul) ---
    cam_embed = cam_trans @ params["cam_embed_w"].T                    # (B*N, hid)
    frustum_embed = frustums.reshape(B, N, K, 3) @ params["frustum_embed_w"].T
    img_embed = frustum_embed - cam_embed.reshape(B, N, 1, hid)        # (B,N,K,hid)
    # NOTE: torch computes img_embed/(norm+1e-7) but discards the result -> no-op.

    bev_grid_tok = bev_grid.reshape(2, Q).T                            # (Q, 2)
    bev_embed = bev_grid_tok @ params["bev_embed_w"].T + params["bev_embed_b"]
    bev_embed = bev_embed[None, None] - cam_embed.reshape(B, N, 1, hid)
    bev_embed = bev_embed / (jnp.linalg.norm(bev_embed, axis=-1, keepdims=True) + 1e-7)

    bev_tok = jnp.transpose(bev_features.reshape(B, hid, Q), (0, 2, 1))  # (B,Q,hid)
    q4 = bev_tok[:, None] + bev_embed                                  # (B,N,Q,hid)
    skip_tok = bev_tok if skip else jnp.zeros_like(bev_tok)

    # pixel tokens (channels-last), camera-major.
    # TODO(synk): fold this NCHW->NHWC transpose into the conv kernel (read
    # (C, pixel) blocks + in-kernel transpose) to save one HBM pass.
    x_cam = jnp.transpose(img_features, (0, 1, 3, 4, 2)).reshape(B * N, K, C)
    emb_cam = img_embed.reshape(B * N, K, hid)

    scale = float(hid) ** (-0.5)
    if use_pallas:
        kh, vh = fused_kv_project(x_cam, emb_cam, params, heads, dim_head)
        a = cross_attention_flash(params["ca"], q4, kh, vh, heads, dim_head, scale)
        z = attention_epilogue(params["ca"], a, skip_tok, heads, dim_head)
    else:
        img_feats = conv_bn_relu_ref(x_cam, params["proj_w"], params["proj_bn"])
        v_feats = conv_bn_relu_ref(x_cam, params["linear_w"], params["linear_bn"])
        k_tok = (img_feats + emb_cam).reshape(B, N * K, hid)
        v_tok = v_feats.reshape(B, N * K, hid)
        q_tok = q4.reshape(B, N * Q, hid)
        z = cross_attention_ref(params["ca"], q_tok, k_tok, v_tok, skip_tok,
                                heads, dim_head, scale, N)

    return jnp.transpose(z.reshape(B, bH, bW, hid), (0, 3, 1, 2))      # NCHW


# ----------------------------------------------------------------------------
# Deterministic parameter init (synthetic weights; no checkpoint loading)
# ----------------------------------------------------------------------------
def init_params(key, c_in, hid, heads, dim_head):
    ks = iter(jax.random.split(key, 64))

    def nrm(shape, s=0.2):
        return s * jax.random.normal(next(ks), shape, dtype=jnp.float32)

    def bn():
        return dict(gamma=1.0 + nrm((hid,), 0.1), beta=nrm((hid,), 0.1),
                    mean=nrm((hid,), 0.1), var=1.0 + jnp.abs(nrm((hid,), 0.1)))

    hdh = heads * dim_head
    p = {
        "linear_w": nrm((hid, c_in)), "linear_bn": bn(),
        "proj_w": nrm((hid, c_in)), "proj_bn": bn(),
        "bev_embed_w": nrm((hid, 2)), "bev_embed_b": nrm((hid,)),
        "frustum_embed_w": nrm((hid, 3)),
        "cam_embed_w": nrm((hid, 4)),
    }
    ca = {}
    for nm in ("q", "k", "v"):
        ca[f"ln_{nm}_g"] = 1.0 + nrm((hid,), 0.1)
        ca[f"ln_{nm}_b"] = nrm((hid,), 0.1)
        ca[f"W_{nm}"] = nrm((hdh, hid))
        ca[f"b_{nm}"] = nrm((hdh,), 0.1)       # qkv_bias=True
    ca["W_o"] = nrm((hid, hdh)); ca["b_o"] = nrm((hid,), 0.1)
    ca["pre_g"] = 1.0 + nrm((hid,), 0.1); ca["pre_b"] = nrm((hid,), 0.1)
    ca["W_1"] = nrm((2 * hid, hid)); ca["b_1"] = nrm((2 * hid,), 0.1)
    ca["W_2"] = nrm((hid, 2 * hid)); ca["b_2"] = nrm((hid,), 0.1)
    ca["post_g"] = 1.0 + nrm((hid,), 0.1); ca["post_b"] = nrm((hid,), 0.1)
    p["ca"] = ca
    return p


if __name__ == "__main__":
    B, N = 2, 2
    C_IN, HID = 4, 16
    HEADS, DIM_HEAD = 2, 8
    FH = FW = 8                 # feature_size
    IH = IW = 32                # img_size
    BH = BW = 8                 # BEV spatial
    DBOUND = (1.0, 5.0, 1.0)    # -> 4 depth bins

    key = jax.random.PRNGKey(0)
    k_par, k_bev, k_img, k_dep, k_meta = jax.random.split(key, 5)
    params = init_params(k_par, C_IN, HID, HEADS, DIM_HEAD)

    frustum = create_frustum((IH, IW), (FH, FW), DBOUND)
    DD = frustum.shape[0]

    bev_features = jax.random.normal(k_bev, (B, HID, BH, BW), dtype=jnp.float32)
    img_features = jax.random.normal(k_img, (B, N, C_IN, FH, FW), dtype=jnp.float32)
    depth = jax.nn.softmax(jax.random.normal(k_dep, (B, N, DD, FH, FW)), axis=2).astype(jnp.float32)
    gy, gx = jnp.meshgrid(jnp.linspace(-1.0, 1.0, BH), jnp.linspace(-1.0, 1.0, BW), indexing="ij")
    bev_grid = jnp.stack([gx, gy]).astype(jnp.float32)                 # (2, bH, bW)

    meta_keys = jax.random.split(k_meta, 3 * B)
    img_metas = []
    for i in range(B):
        img_metas.append({
            "img_translation": 0.5 * jax.random.normal(meta_keys[3 * i], (N, 3), dtype=jnp.float32),
            "img_scale": 1.0 + jax.random.uniform(meta_keys[3 * i + 1], (N,), dtype=jnp.float32),
            "lidar2img": jnp.eye(4, dtype=jnp.float32)[None]
                         + 0.1 * jax.random.normal(meta_keys[3 * i + 2], (N, 4, 4), dtype=jnp.float32),
        })

    out = cross_view_attention_forward(params, frustum, bev_features, img_features,
                                       depth, bev_grid, img_metas, HEADS, DIM_HEAD,
                                       skip=True, use_pallas=True)
    out = jax.block_until_ready(out)

    ref = cross_view_attention_forward(params, frustum, bev_features, img_features,
                                       depth, bev_grid, img_metas, HEADS, DIM_HEAD,
                                       skip=True, use_pallas=False)
    ref = jax.block_until_ready(ref)

    assert out.shape == (B, HID, BH, BW), out.shape
    assert bool(jnp.all(jnp.isfinite(out)))
    max_diff = float(jnp.max(jnp.abs(out - ref)))
    # bf16 MXU operands in the conv/attention kernels vs. default-precision
    # pure-JAX reference; final outputs are LayerNorm-normalized (O(1) scale).
    assert max_diff < 5e-2, f"kernel/reference mismatch: {max_diff}"
    print("KERNEL_OK")
</pallas_src>

<mosaic_0001>
module attributes {stable_mosaic.version = 11 : i64} {
  func.func @_kv_project_kernel(%arg0: i32, %arg1: i32, %arg2: memref<1x64x4xf32, #tpu.memory_space<vmem>>, %arg3: memref<1x64x16xf32, #tpu.memory_space<vmem>>, %arg4: memref<4x32xbf16, #tpu.memory_space<vmem>>, %arg5: memref<1x32xf32, #tpu.memory_space<vmem>>, %arg6: memref<2x16xf32, #tpu.memory_space<vmem>>, %arg7: memref<2x16xf32, #tpu.memory_space<vmem>>, %arg8: memref<2x16x8xbf16, #tpu.memory_space<vmem>>, %arg9: memref<2x1x8xf32, #tpu.memory_space<vmem>>, %arg10: memref<2x16x8xbf16, #tpu.memory_space<vmem>>, %arg11: memref<2x1x8xf32, #tpu.memory_space<vmem>>, %arg12: memref<1x2x64x8xbf16, #tpu.memory_space<vmem>>, %arg13: memref<1x2x64x8xbf16, #tpu.memory_space<vmem>>) attributes {dimension_semantics = [#tpu.dimension_semantics<parallel>, #tpu.dimension_semantics<parallel>], iteration_bounds = array<i64: 4, 1>, scalar_prefetch = 0 : i64, scratch_operands = 0 : i64, tpu.core_type = #tpu.core_type<tc>, window_params = [{transform_indices = @transform_0, window_bounds = array<i64: 1, 64, 4>}, {transform_indices = @transform_1, window_bounds = array<i64: 1, 64, 16>}, {pipeline_mode = #tpu.pipeline_mode<synchronous>, transform_indices = @transform_2, window_bounds = array<i64: 4, 32>}, {pipeline_mode = #tpu.pipeline_mode<synchronous>, transform_indices = @transform_3, window_bounds = array<i64: 1, 32>}, {pipeline_mode = #tpu.pipeline_mode<synchronous>, transform_indices = @transform_4, window_bounds = array<i64: 2, 16>}, {pipeline_mode = #tpu.pipeline_mode<synchronous>, transform_indices = @transform_5, window_bounds = array<i64: 2, 16>}, {pipeline_mode = #tpu.pipeline_mode<synchronous>, transform_indices = @transform_6, window_bounds = array<i64: 2, 16, 8>}, {pipeline_mode = #tpu.pipeline_mode<synchronous>, transform_indices = @transform_7, window_bounds = array<i64: 2, 1, 8>}, {pipeline_mode = #tpu.pipeline_mode<synchronous>, transform_indices = @transform_8, window_bounds = array<i64: 2, 16, 8>}, {pipeline_mode = #tpu.pipeline_mode<synchronous>, transform_indices = @transform_9, window_bounds = array<i64: 2, 1, 8>}, {transform_indices = @transform_10, window_bounds = array<i64: 1, 2, 64, 8>}, {transform_indices = @transform_11, window_bounds = array<i64: 1, 2, 64, 8>}]} {
    %c0 = arith.constant 0 : index
    %c0_0 = arith.constant 0 : index
    %c0_1 = arith.constant 0 : index
    %0 = vector.load %arg2[%c0, %c0_0, %c0_1] : memref<1x64x4xf32, #tpu.memory_space<vmem>>, vector<1x64x4xf32>
    %1 = vector.shape_cast %0 : vector<1x64x4xf32> to vector<64x4xf32>
    %2 = arith.truncf %1 : vector<64x4xf32> to vector<64x4xbf16>
    %c0_2 = arith.constant 0 : index
    %c0_3 = arith.constant 0 : index
    %3 = vector.load %arg4[%c0_2, %c0_3] : memref<4x32xbf16, #tpu.memory_space<vmem>>, vector<4x32xbf16>
    %cst = arith.constant dense<0.000000e+00> : vector<64x32xf32>
    %4 = tpu.matmul %2, %3, %cst {dimension_numbers = #tpu.dot_dimension_numbers<[1], [0], [0], [1], [0, 0, 1, 1], [], []>} : vector<64x4xbf16>, vector<4x32xbf16>, vector<64x32xf32> -> vector<64x32xf32>
    %c0_4 = arith.constant 0 : index
    %c0_5 = arith.constant 0 : index
    %5 = vector.load %arg5[%c0_4, %c0_5] : memref<1x32xf32, #tpu.memory_space<vmem>>, vector<1x32xf32>
    %6 = vector.broadcast %5 : vector<1x32xf32> to vector<64x32xf32>
    %7 = arith.addf %4, %6 : vector<64x32xf32>
    %cst_6 = arith.constant 0.000000e+00 : f32
    %8 = vector.broadcast %cst_6 : f32 to vector<64x32xf32>
    %9 = arith.maximumf %7, %8 : vector<64x32xf32>
    %10 = vector.extract_strided_slice %9 {offsets = [0, 0], sizes = [64, 16], strides = [1, 1]} : vector<64x32xf32> to vector<64x16xf32>
    %c0_7 = arith.constant 0 : index
    %c0_8 = arith.constant 0 : index
    %c0_9 = arith.constant 0 : index
    %11 = vector.load %arg3[%c0_7, %c0_8, %c0_9] : memref<1x64x16xf32, #tpu.memory_space<vmem>>, vector<1x64x16xf32>
    %12 = vector.shape_cast %11 : vector<1x64x16xf32> to vector<64x16xf32>
    %13 = arith.addf %10, %12 : vector<64x16xf32>
    %14 = vector.extract_strided_slice %9 {offsets = [0, 16], sizes = [64, 16], strides = [1, 1]} : vector<64x32xf32> to vector<64x16xf32>
    %c0_10 = arith.constant 0 : index
    %c0_11 = arith.constant 0 : index
    %15 = vector.load %arg6[%c0_10, %c0_11] : memref<2x16xf32, #tpu.memory_space<vmem>>, vector<2x16xf32>
    %c0_12 = arith.constant 0 : index
    %c0_13 = arith.constant 0 : index
    %16 = vector.load %arg7[%c0_12, %c0_13] : memref<2x16xf32, #tpu.memory_space<vmem>>, vector<2x16xf32>
    %17 = vector.extract_strided_slice %15 {offsets = [0, 0], sizes = [1, 16], strides = [1, 1]} : vector<2x16xf32> to vector<1x16xf32>
    %18 = vector.extract_strided_slice %16 {offsets = [0, 0], sizes = [1, 16], strides = [1, 1]} : vector<2x16xf32> to vector<1x16xf32>
    %cst_14 = arith.constant dense<0.000000e+00> : vector<64xf32>
    %19 = vector.multi_reduction <add>, %13, %cst_14 [1] : vector<64x16xf32> to vector<64xf32>
    %20 = vector.shape_cast %19 : vector<64xf32> to vector<64x1xf32>
    %cst_15 = arith.constant 1.600000e+01 : f32
    %21 = vector.broadcast %cst_15 : f32 to vector<64x1xf32>
    %22 = arith.divf %20, %21 : vector<64x1xf32>
    %23 = vector.broadcast %22 : vector<64x1xf32> to vector<64x16xf32>
    %24 = arith.subf %13, %23 : vector<64x16xf32>
    %25 = arith.mulf %24, %24 : vector<64x16xf32>
    %cst_16 = arith.constant dense<0.000000e+00> : vector<64xf32>
    %26 = vector.multi_reduction <add>, %25, %cst_16 [1] : vector<64x16xf32> to vector<64xf32>
    %27 = vector.shape_cast %26 : vector<64xf32> to vector<64x1xf32>
    %cst_17 = arith.constant 1.600000e+01 : f32
    %28 = vector.broadcast %cst_17 : f32 to vector<64x1xf32>
    %29 = arith.divf %27, %28 : vector<64x1xf32>
    %30 = vector.broadcast %22 : vector<64x1xf32> to vector<64x16xf32>
    %31 = arith.subf %13, %30 : vector<64x16xf32>
    %cst_18 = arith.constant 9.99999974E-6 : f32
    %32 = vector.broadcast %cst_18 : f32 to vector<64x1xf32>
    %33 = arith.addf %29, %32 : vector<64x1xf32>
    %34 = math.rsqrt %33 : vector<64x1xf32>
    %35 = vector.broadcast %34 : vector<64x1xf32> to vector<64x16xf32>
    %36 = arith.mulf %31, %35 : vector<64x16xf32>
    %37 = vector.broadcast %17 : vector<1x16xf32> to vector<64x16xf32>
    %38 = arith.mulf %36, %37 : vector<64x16xf32>
    %39 = vector.broadcast %18 : vector<1x16xf32> to vector<64x16xf32>
    %40 = arith.addf %38, %39 : vector<64x16xf32>
    %41 = arith.truncf %40 : vector<64x16xf32> to vector<64x16xbf16>
    %42 = vector.extract_strided_slice %15 {offsets = [1, 0], sizes = [1, 16], strides = [1, 1]} : vector<2x16xf32> to vector<1x16xf32>
    %43 = vector.extract_strided_slice %16 {offsets = [1, 0], sizes = [1, 16], strides = [1, 1]} : vector<2x16xf32> to vector<1x16xf32>
    %cst_19 = arith.constant dense<0.000000e+00> : vector<64xf32>
    %44 = vector.multi_reduction <add>, %14, %cst_19 [1] : vector<64x16xf32> to vector<64xf32>
    %45 = vector.shape_cast %44 : vector<64xf32> to vector<64x1xf32>
    %cst_20 = arith.constant 1.600000e+01 : f32
    %46 = vector.broadcast %cst_20 : f32 to vector<64x1xf32>
    %47 = arith.divf %45, %46 : vector<64x1xf32>
    %48 = vector.broadcast %47 : vector<64x1xf32> to vector<64x16xf32>
    %49 = arith.subf %14, %48 : vector<64x16xf32>
    %50 = arith.mulf %49, %49 : vector<64x16xf32>
    %cst_21 = arith.constant dense<0.000000e+00> : vector<64xf32>
    %51 = vector.multi_reduction <add>, %50, %cst_21 [1] : vector<64x16xf32> to vector<64xf32>
    %52 = vector.shape_cast %51 : vector<64xf32> to vector<64x1xf32>
    %cst_22 = arith.constant 1.600000e+01 : f32
    %53 = vector.broadcast %cst_22 : f32 to vector<64x1xf32>
    %54 = arith.divf %52, %53 : vector<64x1xf32>
    %55 = vector.broadcast %47 : vector<64x1xf32> to vector<64x16xf32>
    %56 = arith.subf %14, %55 : vector<64x16xf32>
    %cst_23 = arith.constant 9.99999974E-6 : f32
    %57 = vector.broadcast %cst_23 : f32 to vector<64x1xf32>
    %58 = arith.addf %54, %57 : vector<64x1xf32>
    %59 = math.rsqrt %58 : vector<64x1xf32>
    %60 = vector.broadcast %59 : vector<64x1xf32> to vector<64x16xf32>
    %61 = arith.mulf %56, %60 : vector<64x16xf32>
    %62 = vector.broadcast %42 : vector<1x16xf32> to vector<64x16xf32>
    %63 = arith.mulf %61, %62 : vector<64x16xf32>
    %64 = vector.broadcast %43 : vector<1x16xf32> to vector<64x16xf32>
    %65 = arith.addf %63, %64 : vector<64x16xf32>
    %66 = arith.truncf %65 : vector<64x16xf32> to vector<64x16xbf16>
    %c0_24 = arith.constant 0 : index
    %c0_25 = arith.constant 0 : index
    %c0_26 = arith.constant 0 : index
    %67 = vector.load %arg8[%c0_24, %c0_25, %c0_26] : memref<2x16x8xbf16, #tpu.memory_space<vmem>>, vector<1x16x8xbf16>
    %68 = vector.shape_cast %67 : vector<1x16x8xbf16> to vector<16x8xbf16>
    %cst_27 = arith.constant dense<0.000000e+00> : vector<64x8xf32>
    %69 = tpu.matmul %41, %68, %cst_27 {dimension_numbers = #tpu.dot_dimension_numbers<[1], [0], [0], [1], [0, 0, 1, 1], [], []>} : vector<64x16xbf16>, vector<16x8xbf16>, vector<64x8xf32> -> vector<64x8xf32>
    %c0_28 = arith.constant 0 : index
    %c0_29 = arith.constant 0 : index
    %c0_30 = arith.constant 0 : index
    %70 = vector.load %arg9[%c0_28, %c0_29, %c0_30] : memref<2x1x8xf32, #tpu.memory_space<vmem>>, vector<1x1x8xf32>
    %71 = vector.shape_cast %70 : vector<1x1x8xf32> to vector<1x8xf32>
    %72 = vector.broadcast %71 : vector<1x8xf32> to vector<64x8xf32>
    %73 = arith.addf %69, %72 : vector<64x8xf32>
    %74 = arith.truncf %73 : vector<64x8xf32> to vector<64x8xbf16>
    %c0_31 = arith.constant 0 : index
    %c0_32 = arith.constant 0 : index
    %c0_33 = arith.constant 0 : index
    %c0_34 = arith.constant 0 : index
    %75 = vector.load %arg12[%c0_31, %c0_32, %c0_33, %c0_34] : memref<1x2x64x8xbf16, #tpu.memory_space<vmem>>, vector<1x1x64x8xbf16>
    %76 = vector.shape_cast %75 : vector<1x1x64x8xbf16> to vector<64x8xbf16>
    %77 = vector.shape_cast %74 : vector<64x8xbf16> to vector<1x1x64x8xbf16>
    tpu.vector_store %arg12[%c0_31, %c0_32, %c0_33, %c0_34], %77 {strides = array<i32>} : memref<1x2x64x8xbf16, #tpu.memory_space<vmem>>, vector<1x1x64x8xbf16>,
    %c0_35 = arith.constant 0 : index
    %c0_36 = arith.constant 0 : index
    %c0_37 = arith.constant 0 : index
    %78 = vector.load %arg10[%c0_35, %c0_36, %c0_37] : memref<2x16x8xbf16, #tpu.memory_space<vmem>>, vector<1x16x8xbf16>
    %79 = vector.shape_cast %78 : vector<1x16x8xbf16> to vector<16x8xbf16>
    %cst_38 = arith.constant dense<0.000000e+00> : vector<64x8xf32>
    %80 = tpu.matmul %66, %79, %cst_38 {dimension_numbers = #tpu.dot_dimension_numbers<[1], [0], [0], [1], [0, 0, 1, 1], [], []>} : vector<64x16xbf16>, vector<16x8xbf16>, vector<64x8xf32> -> vector<64x8xf32>
    %c0_39 = arith.constant 0 : index
    %c0_40 = arith.constant 0 : index
    %c0_41 = arith.constant 0 : index
    %81 = vector.load %arg11[%c0_39, %c0_40, %c0_41] : memref<2x1x8xf32, #tpu.memory_space<vmem>>, vector<1x1x8xf32>
    %82 = vector.shape_cast %81 : vector<1x1x8xf32> to vector<1x8xf32>
    %83 = vector.broadcast %82 : vector<1x8xf32> to vector<64x8xf32>
    %84 = arith.addf %80, %83 : vector<64x8xf32>
    %85 = arith.truncf %84 : vector<64x8xf32> to vector<64x8xbf16>
    %c0_42 = arith.constant 0 : index
    %c0_43 = arith.constant 0 : index
    %c0_44 = arith.constant 0 : index
    %c0_45 = arith.constant 0 : index
    %86 = vector.load %arg13[%c0_42, %c0_43, %c0_44, %c0_45] : memref<1x2x64x8xbf16, #tpu.memory_space<vmem>>, vector<1x1x64x8xbf16>
    %87 = vector.shape_cast %86 : vector<1x1x64x8xbf16> to vector<64x8xbf16>
    %88 = vector.shape_cast %85 : vector<64x8xbf16> to vector<1x1x64x8xbf16>
    tpu.vector_store %arg13[%c0_42, %c0_43, %c0_44, %c0_45], %88 {strides = array<i32>} : memref<1x2x64x8xbf16, #tpu.memory_space<vmem>>, vector<1x1x64x8xbf16>,
    %c1 = arith.constant 1 : index
    %c0_46 = arith.constant 0 : index
    %c0_47 = arith.constant 0 : index
    %89 = vector.load %arg8[%c1, %c0_46, %c0_47] : memref<2x16x8xbf16, #tpu.memory_space<vmem>>, vector<1x16x8xbf16>
    %90 = vector.shape_cast %89 : vector<1x16x8xbf16> to vector<16x8xbf16>
    %cst_48 = arith.constant dense<0.000000e+00> : vector<64x8xf32>
    %91 = tpu.matmul %41, %90, %cst_48 {dimension_numbers = #tpu.dot_dimension_numbers<[1], [0], [0], [1], [0, 0, 1, 1], [], []>} : vector<64x16xbf16>, vector<16x8xbf16>, vector<64x8xf32> -> vector<64x8xf32>
    %c1_49 = arith.constant 1 : index
    %c0_50 = arith.constant 0 : index
    %c0_51 = arith.constant 0 : index
    %92 = vector.load %arg9[%c1_49, %c0_50, %c0_51] : memref<2x1x8xf32, #tpu.memory_space<vmem>>, vector<1x1x8xf32>
    %93 = vector.shape_cast %92 : vector<1x1x8xf32> to vector<1x8xf32>
    %94 = vector.broadcast %93 : vector<1x8xf32> to vector<64x8xf32>
    %95 = arith.addf %91, %94 : vector<64x8xf32>
    %96 = arith.truncf %95 : vector<64x8xf32> to vector<64x8xbf16>
    %c0_52 = arith.constant 0 : index
    %c1_53 = arith.constant 1 : index
    %c0_54 = arith.constant 0 : index
    %c0_55 = arith.constant 0 : index
    %97 = vector.load %arg12[%c0_52, %c1_53, %c0_54, %c0_55] : memref<1x2x64x8xbf16, #tpu.memory_space<vmem>>, vector<1x1x64x8xbf16>
    %98 = vector.shape_cast %97 : vector<1x1x64x8xbf16> to vector<64x8xbf16>
    %99 = vector.shape_cast %96 : vector<64x8xbf16> to vector<1x1x64x8xbf16>
    tpu.vector_store %arg12[%c0_52, %c1_53, %c0_54, %c0_55], %99 {strides = array<i32>} : memref<1x2x64x8xbf16, #tpu.memory_space<vmem>>, vector<1x1x64x8xbf16>,
    %c1_56 = arith.constant 1 : index
    %c0_57 = arith.constant 0 : index
    %c0_58 = arith.constant 0 : index
    %100 = vector.load %arg10[%c1_56, %c0_57, %c0_58] : memref<2x16x8xbf16, #tpu.memory_space<vmem>>, vector<1x16x8xbf16>
    %101 = vector.shape_cast %100 : vector<1x16x8xbf16> to vector<16x8xbf16>
    %cst_59 = arith.constant dense<0.000000e+00> : vector<64x8xf32>
    %102 = tpu.matmul %66, %101, %cst_59 {dimension_numbers = #tpu.dot_dimension_numbers<[1], [0], [0], [1], [0, 0, 1, 1], [], []>} : vector<64x16xbf16>, vector<16x8xbf16>, vector<64x8xf32> -> vector<64x8xf32>
    %c1_60 = arith.constant 1 : index
    %c0_61 = arith.constant 0 : index
    %c0_62 = arith.constant 0 : index
    %103 = vector.load %arg11[%c1_60, %c0_61, %c0_62] : memref<2x1x8xf32, #tpu.memory_space<vmem>>, vector<1x1x8xf32>
    %104 = vector.shape_cast %103 : vector<1x1x8xf32> to vector<1x8xf32>
    %105 = vector.broadcast %104 : vector<1x8xf32> to vector<64x8xf32>
    %106 = arith.addf %102, %105 : vector<64x8xf32>
    %107 = arith.truncf %106 : vector<64x8xf32> to vector<64x8xbf16>
    %c0_63 = arith.constant 0 : index
    %c1_64 = arith.constant 1 : index
    %c0_65 = arith.constant 0 : index
    %c0_66 = arith.constant 0 : index
    %108 = vector.load %arg13[%c0_63, %c1_64, %c0_65, %c0_66] : memref<1x2x64x8xbf16, #tpu.memory_space<vmem>>, vector<1x1x64x8xbf16>
    %109 = vector.shape_cast %108 : vector<1x1x64x8xbf16> to vector<64x8xbf16>
    %110 = vector.shape_cast %107 : vector<64x8xbf16> to vector<1x1x64x8xbf16>
    tpu.vector_store %arg13[%c0_63, %c1_64, %c0_65, %c0_66], %110 {strides = array<i32>} : memref<1x2x64x8xbf16, #tpu.memory_space<vmem>>, vector<1x1x64x8xbf16>,
    return
  }
  func.func @transform_0(%arg0: i32, %arg1: i32) -> (i32, i32, i32) {
    %c0_i32 = arith.constant 0 : i32
    %c0_i32_0 = arith.constant 0 : i32
    return %arg0, %arg1, %c0_i32 : i32, i32, i32
  }
  func.func @transform_1(%arg0: i32, %arg1: i32) -> (i32, i32, i32) {
    %c0_i32 = arith.constant 0 : i32
    %c0_i32_0 = arith.constant 0 : i32
    return %arg0, %arg1, %c0_i32 : i32, i32, i32
  }
  func.func @transform_2(%arg0: i32, %arg1: i32) -> (i32, i32) {
    %c0_i32 = arith.constant 0 : i32
    %c0_i32_0 = arith.constant 0 : i32
    %c0_i32_1 = arith.constant 0 : i32
    return %c0_i32, %c0_i32_0 : i32, i32
  }
  func.func @transform_3(%arg0: i32, %arg1: i32) -> (i32, i32) {
    %c0_i32 = arith.constant 0 : i32
    %c0_i32_0 = arith.constant 0 : i32
    %c0_i32_1 = arith.constant 0 : i32
    return %c0_i32, %c0_i32_0 : i32, i32
  }
  func.func @transform_4(%arg0: i32, %arg1: i32) -> (i32, i32) {
    %c0_i32 = arith.constant 0 : i32
    %c0_i32_0 = arith.constant 0 : i32
    %c0_i32_1 = arith.constant 0 : i32
    return %c0_i32, %c0_i32_0 : i32, i32
  }
  func.func @transform_5(%arg0: i32, %arg1: i32) -> (i32, i32) {
    %c0_i32 = arith.constant 0 : i32
    %c0_i32_0 = arith.constant 0 : i32
    %c0_i32_1 = arith.constant 0 : i32
    return %c0_i32, %c0_i32_0 : i32, i32
  }
  func.func @transform_6(%arg0: i32, %arg1: i32) -> (i32, i32, i32) {
    %c0_i32 = arith.constant 0 : i32
    %c0_i32_0 = arith.constant 0 : i32
    %c0_i32_1 = arith.constant 0 : i32
    %c0_i32_2 = arith.constant 0 : i32
    return %c0_i32, %c0_i32_0, %c0_i32_1 : i32, i32, i32
  }
  func.func @transform_7(%arg0: i32, %arg1: i32) -> (i32, i32, i32) {
    %c0_i32 = arith.constant 0 : i32
    %c0_i32_0 = arith.constant 0 : i32
    %c0_i32_1 = arith.constant 0 : i32
    %c0_i32_2 = arith.constant 0 : i32
    return %c0_i32, %c0_i32_0, %c0_i32_1 : i32, i32, i32
  }
  func.func @transform_8(%arg0: i32, %arg1: i32) -> (i32, i32, i32) {
    %c0_i32 = arith.constant 0 : i32
    %c0_i32_0 = arith.constant 0 : i32
    %c0_i32_1 = arith.constant 0 : i32
    %c0_i32_2 = arith.constant 0 : i32
    return %c0_i32, %c0_i32_0, %c0_i32_1 : i32, i32, i32
  }
  func.func @transform_9(%arg0: i32, %arg1: i32) -> (i32, i32, i32) {
    %c0_i32 = arith.constant 0 : i32
    %c0_i32_0 = arith.constant 0 : i32
    %c0_i32_1 = arith.constant 0 : i32
    %c0_i32_2 = arith.constant 0 : i32
    return %c0_i32, %c0_i32_0, %c0_i32_1 : i32, i32, i32
  }
  func.func @transform_10(%arg0: i32, %arg1: i32) -> (i32, i32, i32, i32) {
    %c0_i32 = arith.constant 0 : i32
    %c0_i32_0 = arith.constant 0 : i32
    %c0_i32_1 = arith.constant 0 : i32
    return %arg0, %c0_i32, %arg1, %c0_i32_0 : i32, i32, i32, i32
  }
  func.func @transform_11(%arg0: i32, %arg1: i32) -> (i32, i32, i32, i32) {
    %c0_i32 = arith.constant 0 : i32
    %c0_i32_0 = arith.constant 0 : i32
    %c0_i32_1 = arith.constant 0 : i32
    return %arg0, %c0_i32, %arg1, %c0_i32_0 : i32, i32, i32, i32
  }
}

</mosaic_0001>

<llo_original>
// kernel: tpu_custom_call.1
$region0: #{tpu_custom_call.1}
  #allocation0 [shape = 'u32[]', space=smem, size = 0x4, offset = 0x4, fixed_abs, tag = 'smem constant byte address 0x4 - core index']
  #allocation1 [shape = 'u32[144,128]{1,0:T(1,128)}', space=vmem, size = 0x12000, scoped, tag = 'internal scratch']
  %s0 = inlined_call_operand.vmem [shape: f32[4,64,4], index: 0, kind: input, shape index: {}]
  %s1 = inlined_call_operand.vmem [shape: f32[4,64,16], index: 1, kind: input, shape index: {}]
  %s2 = inlined_call_operand.vmem [shape: bf16[4,32], index: 2, kind: input, shape index: {}]
  %s3 = inlined_call_operand.vmem [shape: f32[1,32], index: 3, kind: input, shape index: {}]
  %s4 = inlined_call_operand.vmem [shape: f32[2,16], index: 4, kind: input, shape index: {}]
  %s5 = inlined_call_operand.vmem [shape: f32[2,16], index: 5, kind: input, shape index: {}]
  %s6 = inlined_call_operand.vmem [shape: bf16[2,16,8], index: 6, kind: input, shape index: {}]
  %s7 = inlined_call_operand.vmem [shape: f32[2,1,8], index: 7, kind: input, shape index: {}]
  %s8 = inlined_call_operand.vmem [shape: bf16[2,16,8], index: 8, kind: input, shape index: {}]
  %s9 = inlined_call_operand.vmem [shape: f32[2,1,8], index: 9, kind: input, shape index: {}]
  %s10 = inlined_call_operand.vmem [shape: bf16[4,2,64,8], index: 10, kind: output, shape index: {0}]
  %s11 = inlined_call_operand.vmem [shape: bf16[4,2,64,8], index: 11, kind: output, shape index: {1}]
  %12 = xla_tuple %s10, %s11
  %s13 = sld [smem:[#allocation0]]
  $region81: #{tpu_custom_call.1} parent=0
    _
  %s15 = ssub.s32 1, %s13
  %s16 = scalar_select 0, %s15, %s13
  loop: start=0, step=1, limit=6
  $region2: #{tpu_custom_call.1} parent=0 // loop_pre_header
    _
  $region3: #{tpu_custom_call.1} parent=0 // loop_header
    %s18 = sphi 0, %s22
    %p19 = scmp.ge.s32.totalorder %s18, 6
    %s25 = sphi 0, %s37
    %s26 = sphi 0, %s33
    %s27 = sphi 0, %s25
    %s28 = sphi 0, %s26
    %s29 = sphi 0, %s27
    %s30 = sphi 0, %s28
    %s42 = sphi 0, %s44
    %s45 = sphi 0, %s42
    %s46 = sphi 0, %s45
    %s62 = sphi 0, %s46
    %s70 = sphi 0, %s72
    %s73 = sphi 0, %s70
    %s74 = sphi 0, %s73
    %s90 = sphi 0, %s74
    %s94 = sphi 0, %s94
    %s96 = sphi 0, %s94
    %s97 = sphi 0, %s96
    %s111 = sphi 0, %s97
    %s115 = sphi 0, %s115
    %s117 = sphi 0, %s115
    %s118 = sphi 0, %s117
    %s132 = sphi 0, %s118
    %s136 = sphi 0, %s136
    %s138 = sphi 0, %s136
    %s139 = sphi 0, %s138
    %s153 = sphi 0, %s139
    %s157 = sphi 0, %s157
    %s159 = sphi 0, %s157
    %s160 = sphi 0, %s159
    %s174 = sphi 0, %s160
    %s178 = sphi 0, %s178
    %s180 = sphi 0, %s178
    %s181 = sphi 0, %s180
    %s195 = sphi 0, %s181
    %s199 = sphi 0, %s199
    %s201 = sphi 0, %s199
    %s202 = sphi 0, %s201
    %s216 = sphi 0, %s202
    %s220 = sphi 0, %s220
    %s222 = sphi 0, %s220
    %s223 = sphi 0, %s222
    %s237 = sphi 0, %s223
    %s241 = sphi 0, %s241
    %s243 = sphi 0, %s241
    %s244 = sphi 0, %s243
    %s258 = sphi 0, %s244
    %s266 = sphi 0, %s268
    %s269 = sphi 0, %s266
    %s270 = sphi 0, %s269
    %s286 = sphi 0, %s270
    %s294 = sphi 0, %s296
    %s297 = sphi 0, %s294
    %s298 = sphi 0, %s297
    %s314 = sphi 0, %s298
  $region4: #{tpu_custom_call.1} parent=0 // loop_header_branch
    %21 = sbr.rel (%p19) target = $region8
  $region5: #{tpu_custom_call.1} parent=0 // loop_body
    %s23 = ssub.s32 %s18, 1
    %s24 = ssub.s32 %s18, 2
    %s31 = sadd.s32 1, %s26
    %p32 = scmp.ge.s32.totalorder %s31, 1
    %s33 = scalar_select %p32, 0, %s31
    %s34 = sadd.s32 1, %s25
    %s35 = scalar_select %p32, %s34, %s25
    %p36 = scmp.ge.s32.totalorder %s35, 4
    %s37 = scalar_select %p36, 0, %s35
    %s38 = ssub.s32 %s25, %s37
    %s39 = ssub.s32 %s26, %s33
    %s40 = sor.u32 %s38, %s39
    %p41 = scmp.eq.s32.totalorder %s40, 0
    %s43 = sadd.s32 %s42, 1
    %s44 = scalar_select %p41, %s42, %s43
    %p47 = pneg %p41
    %p48 = scmp.eq.s32.totalorder %s18, 3
    %p49 = por %p47, %p48
    %p50 = scmp.ne.s32.totalorder %s42, %s45
    %p51 = scmp.eq.s32.totalorder %s18, 0
    %p52 = por %p50, %p51
    %p53 = scmp.ne.s32.totalorder %s42, %s45
    %p54 = scmp.eq.s32.totalorder %s23, 3
    %p55 = por %p53, %p54
    %p56 = scmp.ne.s32.totalorder %s45, %s46
    %p57 = scmp.eq.s32.totalorder %s23, 0
    %p58 = por %p56, %p57
    %p59 = scmp.ne.s32.totalorder %s45, %s46
    %p60 = scmp.eq.s32.totalorder %s24, 3
    %p61 = por %p59, %p60
    %p63 = scmp.ne.s32.totalorder %s46, %s62
    %p64 = scmp.eq.s32.totalorder %s24, 0
    %p65 = por %p63, %p64
    %s66 = ssub.s32 %s25, %s37
    %s67 = ssub.s32 %s26, %s33
    %s68 = sor.u32 %s66, %s67
    %p69 = scmp.eq.s32.totalorder %s68, 0
    %s71 = sadd.s32 %s70, 1
    %s72 = scalar_select %p69, %s70, %s71
    %p75 = pneg %p69
    %p76 = scmp.eq.s32.totalorder %s18, 3
    %p77 = por %p75, %p76
    %p78 = scmp.ne.s32.totalorder %s70, %s73
    %p79 = scmp.eq.s32.totalorder %s18, 0
    %p80 = por %p78, %p79
    %p81 = scmp.ne.s32.totalorder %s70, %s73
    %p82 = scmp.eq.s32.totalorder %s23, 3
    %p83 = por %p81, %p82
    %p84 = scmp.ne.s32.totalorder %s73, %s74
    %p85 = scmp.eq.s32.totalorder %s23, 0
    %p86 = por %p84, %p85
    %p87 = scmp.ne.s32.totalorder %s73, %s74
    %p88 = scmp.eq.s32.totalorder %s24, 3
    %p89 = por %p87, %p88
    %p91 = scmp.ne.s32.totalorder %s74, %s90
    %p92 = scmp.eq.s32.totalorder %s24, 0
    %p93 = por %p91, %p92
    %s95 = sadd.s32 %s94, 1
    %p98 = scmp.eq.s32.totalorder %s18, 3
    %p99 = scmp.ne.s32.totalorder %s94, %s96
    %p100 = scmp.eq.s32.totalorder %s18, 0
    %p101 = por %p99, %p100
    %p102 = scmp.ne.s32.totalorder %s94, %s96
    %p103 = scmp.eq.s32.totalorder %s23, 3
    %p104 = por %p102, %p103
    %p105 = scmp.ne.s32.totalorder %s96, %s97
    %p106 = scmp.eq.s32.totalorder %s23, 0
    %p107 = por %p105, %p106
    %p108 = scmp.ne.s32.totalorder %s96, %s97
    %p109 = scmp.eq.s32.totalorder %s24, 3
    %p110 = por %p108, %p109
    %p112 = scmp.ne.s32.totalorder %s97, %s111
    %p113 = scmp.eq.s32.totalorder %s24, 0
    %p114 = por %p112, %p113
    %s116 = sadd.s32 %s115, 1
    %p119 = scmp.eq.s32.totalorder %s18, 3
    %p120 = scmp.ne.s32.totalorder %s115, %s117
    %p121 = scmp.eq.s32.totalorder %s18, 0
    %p122 = por %p120, %p121
    %p123 = scmp.ne.s32.totalorder %s115, %s117
    %p124 = scmp.eq.s32.totalorder %s23, 3
    %p125 = por %p123, %p124
    %p126 = scmp.ne.s32.totalorder %s117, %s118
    %p127 = scmp.eq.s32.totalorder %s23, 0
    %p128 = por %p126, %p127
    %p129 = scmp.ne.s32.totalorder %s117, %s118
    %p130 = scmp.eq.s32.totalorder %s24, 3
    %p131 = por %p129, %p130
    %p133 = scmp.ne.s32.totalorder %s118, %s132
    %p134 = scmp.eq.s32.totalorder %s24, 0
    %p135 = por %p133, %p134
    %s137 = sadd.s32 %s136, 1
    %p140 = scmp.eq.s32.totalorder %s18, 3
    %p141 = scmp.ne.s32.totalorder %s136, %s138
    %p142 = scmp.eq.s32.totalorder %s18, 0
    %p143 = por %p141, %p142
    %p144 = scmp.ne.s32.totalorder %s136, %s138
    %p145 = scmp.eq.s32.totalorder %s23, 3
    %p146 = por %p144, %p145
    %p147 = scmp.ne.s32.totalorder %s138, %s139
    %p148 = scmp.eq.s32.totalorder %s23, 0
    %p149 = por %p147, %p148
    %p150 = scmp.ne.s32.totalorder %s138, %s139
    %p151 = scmp.eq.s32.totalorder %s24, 3
    %p152 = por %p150, %p151
    %p154 = scmp.ne.s32.totalorder %s139, %s153
    %p155 = scmp.eq.s32.totalorder %s24, 0
    %p156 = por %p154, %p155
    %s158 = sadd.s32 %s157, 1
    %p161 = scmp.eq.s32.totalorder %s18, 3
    %p162 = scmp.ne.s32.totalorder %s157, %s159
    %p163 = scmp.eq.s32.totalorder %s18, 0
    %p164 = por %p162, %p163
    %p165 = scmp.ne.s32.totalorder %s157, %s159
    %p166 = scmp.eq.s32.totalorder %s23, 3
    %p167 = por %p165, %p166
    %p168 = scmp.ne.s32.totalorder %s159, %s160
    %p169 = scmp.eq.s32.totalorder %s23, 0
    %p170 = por %p168, %p169
    %p171 = scmp.ne.s32.totalorder %s159, %s160
    %p172 = scmp.eq.s32.totalorder %s24, 3
    %p173 = por %p171, %p172
    %p175 = scmp.ne.s32.totalorder %s160, %s174
    %p176 = scmp.eq.s32.totalorder %s24, 0
    %p177 = por %p175, %p176
    %s179 = sadd.s32 %s178, 1
    %p182 = scmp.eq.s32.totalorder %s18, 3
    %p183 = scmp.ne.s32.totalorder %s178, %s180
    %p184 = scmp.eq.s32.totalorder %s18, 0
    %p185 = por %p183, %p184
    %p186 = scmp.ne.s32.totalorder %s178, %s180
    %p187 = scmp.eq.s32.totalorder %s23, 3
    %p188 = por %p186, %p187
    %p189 = scmp.ne.s32.totalorder %s180, %s181
    %p190 = scmp.eq.s32.totalorder %s23, 0
    %p191 = por %p189, %p190
    %p192 = scmp.ne.s32.totalorder %s180, %s181
    %p193 = scmp.eq.s32.totalorder %s24, 3
    %p194 = por %p192, %p193
    %p196 = scmp.ne.s32.totalorder %s181, %s195
    %p197 = scmp.eq.s32.totalorder %s24, 0
    %p198 = por %p196, %p197
    %s200 = sadd.s32 %s199, 1
    %p203 = scmp.eq.s32.totalorder %s18, 3
    %p204 = scmp.ne.s32.totalorder %s199, %s201
    %p205 = scmp.eq.s32.totalorder %s18, 0
    %p206 = por %p204, %p205
    %p207 = scmp.ne.s32.totalorder %s199, %s201
    %p208 = scmp.eq.s32.totalorder %s23, 3
    %p209 = por %p207, %p208
    %p210 = scmp.ne.s32.totalorder %s201, %s202
    %p211 = scmp.eq.s32.totalorder %s23, 0
    %p212 = por %p210, %p211
    %p213 = scmp.ne.s32.totalorder %s201, %s202
    %p214 = scmp.eq.s32.totalorder %s24, 3
    %p215 = por %p213, %p214
    %p217 = scmp.ne.s32.totalorder %s202, %s216
    %p218 = scmp.eq.s32.totalorder %s24, 0
    %p219 = por %p217, %p218
    %s221 = sadd.s32 %s220, 1
    %p224 = scmp.eq.s32.totalorder %s18, 3
    %p225 = scmp.ne.s32.totalorder %s220, %s222
    %p226 = scmp.eq.s32.totalorder %s18, 0
    %p227 = por %p225, %p226
    %p228 = scmp.ne.s32.totalorder %s220, %s222
    %p229 = scmp.eq.s32.totalorder %s23, 3
    %p230 = por %p228, %p229
    %p231 = scmp.ne.s32.totalorder %s222, %s223
    %p232 = scmp.eq.s32.totalorder %s23, 0
    %p233 = por %p231, %p232
    %p234 = scmp.ne.s32.totalorder %s222, %s223
    %p235 = scmp.eq.s32.totalorder %s24, 3
    %p236 = por %p234, %p235
    %p238 = scmp.ne.s32.totalorder %s223, %s237
    %p239 = scmp.eq.s32.totalorder %s24, 0
    %p240 = por %p238, %p239
    %s242 = sadd.s32 %s241, 1
    %p245 = scmp.eq.s32.totalorder %s18, 3
    %p246 = scmp.ne.s32.totalorder %s241, %s243
    %p247 = scmp.eq.s32.totalorder %s18, 0
    %p248 = por %p246, %p247
    %p249 = scmp.ne.s32.totalorder %s241, %s243
    %p250 = scmp.eq.s32.totalorder %s23, 3
    %p251 = por %p249, %p250
    %p252 = scmp.ne.s32.totalorder %s243, %s244
    %p253 = scmp.eq.s32.totalorder %s23, 0
    %p254 = por %p252, %p253
    %p255 = scmp.ne.s32.totalorder %s243, %s244
    %p256 = scmp.eq.s32.totalorder %s24, 3
    %p257 = por %p255, %p256
    %p259 = scmp.ne.s32.totalorder %s244, %s258
    %p260 = scmp.eq.s32.totalorder %s24, 0
    %p261 = por %p259, %p260
    %s262 = ssub.s32 %s25, %s37
    %s263 = ssub.s32 %s26, %s33
    %s264 = sor.u32 %s262, %s263
    %p265 = scmp.eq.s32.totalorder %s264, 0
    %s267 = sadd.s32 %s266, 1
    %s268 = scalar_select %p265, %s266, %s267
    %p271 = pneg %p265
    %p272 = scmp.eq.s32.totalorder %s18, 3
    %p273 = por %p271, %p272
    %p274 = scmp.ne.s32.totalorder %s266, %s269
    %p275 = scmp.eq.s32.totalorder %s18, 0
    %p276 = por %p274, %p275
    %p277 = scmp.ne.s32.totalorder %s266, %s269
    %p278 = scmp.eq.s32.totalorder %s23, 3
    %p279 = por %p277, %p278
    %p280 = scmp.ne.s32.totalorder %s269, %s270
    %p281 = scmp.eq.s32.totalorder %s23, 0
    %p282 = por %p280, %p281
    %p283 = scmp.ne.s32.totalorder %s269, %s270
    %p284 = scmp.eq.s32.totalorder %s24, 3
    %p285 = por %p283, %p284
    %p287 = scmp.ne.s32.totalorder %s270, %s286
    %p288 = scmp.eq.s32.totalorder %s24, 0
    %p289 = por %p287, %p288
    %s290 = ssub.s32 %s25, %s37
    %s291 = ssub.s32 %s26, %s33
    %s292 = sor.u32 %s290, %s291
    %p293 = scmp.eq.s32.totalorder %s292, 0
    %s295 = sadd.s32 %s294, 1
    %s296 = scalar_select %p293, %s294, %s295
    %p299 = pneg %p293
    %p300 = scmp.eq.s32.totalorder %s18, 3
    %p301 = por %p299, %p300
    %p302 = scmp.ne.s32.totalorder %s294, %s297
    %p303 = scmp.eq.s32.totalorder %s18, 0
    %p304 = por %p302, %p303
    %p305 = scmp.ne.s32.totalorder %s294, %s297
    %p306 = scmp.eq.s32.totalorder %s23, 3
    %p307 = por %p305, %p306
    %p308 = scmp.ne.s32.totalorder %s297, %s298
    %p309 = scmp.eq.s32.totalorder %s23, 0
    %p310 = por %p308, %p309
    %p311 = scmp.ne.s32.totalorder %s297, %s298
    %p312 = scmp.eq.s32.totalorder %s24, 3
    %p313 = por %p311, %p312
    %p315 = scmp.ne.s32.totalorder %s298, %s314
    %p316 = scmp.eq.s32.totalorder %s24, 0
    %p317 = por %p315, %p316
    %p318 = scmp.le.s32.totalorder 1, %s18
    %p319 = scmp.lt.s32.totalorder %s18, 5
    %p320 = pnand %p318, %p319
    %p321 = pneg %p320
    // Predicated region
    $region9: #{tpu_custom_call.1} parent=5 // pred_check
      _
    $region10: #{tpu_custom_call.1} parent=5 // pred_check_branch
      %323 = sbr.rel (%p320) target = $region12
    $region11: #{tpu_custom_call.1} parent=5 // pred_region
      %s324 = ssub.s32 %s18, 1
      // Predicated region
      $region13: #{tpu_custom_call.1} parent=11 // pred_check
        %p325 = pneg %p107
      $region14: #{tpu_custom_call.1} parent=11 // pred_check_branch
        %327 = sbr.rel (%p325) target = $region16
      $region15: #{tpu_custom_call.1} parent=11 // pred_region
        _
      $region16: #{tpu_custom_call.1} parent=11 // pred_fallthru
        _
      // Predicated region
      $region17: #{tpu_custom_call.1} parent=11 // pred_check
        %p328 = pneg %p128
      $region18: #{tpu_custom_call.1} parent=11 // pred_check_branch
        %330 = sbr.rel (%p328) target = $region20
      $region19: #{tpu_custom_call.1} parent=11 // pred_region
        _
      $region20: #{tpu_custom_call.1} parent=11 // pred_fallthru
        _
      // Predicated region
      $region21: #{tpu_custom_call.1} parent=11 // pred_check
        %p331 = pneg %p149
      $region22: #{tpu_custom_call.1} parent=11 // pred_check_branch
        %333 = sbr.rel (%p331) target = $region24
      $region23: #{tpu_custom_call.1} parent=11 // pred_region
        _
      $region24: #{tpu_custom_call.1} parent=11 // pred_fallthru
        _
      // Predicated region
      $region25: #{tpu_custom_call.1} parent=11 // pred_check
        %p334 = pneg %p170
      $region26: #{tpu_custom_call.1} parent=11 // pred_check_branch
        %336 = sbr.rel (%p334) target = $region28
      $region27: #{tpu_custom_call.1} parent=11 // pred_region
        _
      $region28: #{tpu_custom_call.1} parent=11 // pred_fallthru
        _
      // Predicated region
      $region29: #{tpu_custom_call.1} parent=11 // pred_check
        %p337 = pneg %p191
      $region30: #{tpu_custom_call.1} parent=11 // pred_check_branch
        %339 = sbr.rel (%p337) target = $region32
      $region31: #{tpu_custom_call.1} parent=11 // pred_region
        _
      $region32: #{tpu_custom_call.1} parent=11 // pred_fallthru
        _
      // Predicated region
      $region33: #{tpu_custom_call.1} parent=11 // pred_check
        %p340 = pneg %p212
      $region34: #{tpu_custom_call.1} parent=11 // pred_check_branch
        %342 = sbr.rel (%p340) target = $region36
      $region35: #{tpu_custom_call.1} parent=11 // pred_region
        _
      $region36: #{tpu_custom_call.1} parent=11 // pred_fallthru
        _
      // Predicated region
      $region37: #{tpu_custom_call.1} parent=11 // pred_check
        %p343 = pneg %p233
      $region38: #{tpu_custom_call.1} parent=11 // pred_check_branch
        %345 = sbr.rel (%p343) target = $region40
      $region39: #{tpu_custom_call.1} parent=11 // pred_region
        _
      $region40: #{tpu_custom_call.1} parent=11 // pred_fallthru
        _
      // Predicated region
      $region41: #{tpu_custom_call.1} parent=11 // pred_check
        %p346 = pneg %p254
      $region42: #{tpu_custom_call.1} parent=11 // pred_check_branch
        %348 = sbr.rel (%p346) target = $region44
      $region43: #{tpu_custom_call.1} parent=11 // pred_region
        _
      $region44: #{tpu_custom_call.1} parent=11 // pred_fallthru
        _
    $region12: #{tpu_custom_call.1} parent=5 // pred_fallthru
      _
    %p349 = scmp.lt.s32.totalorder %s18, 4
    // Predicated region
    $region45: #{tpu_custom_call.1} parent=5 // pred_check
      %p350 = pneg %p349
    $region46: #{tpu_custom_call.1} parent=5 // pred_check_branch
      %352 = sbr.rel (%p350) target = $region48
    $region47: #{tpu_custom_call.1} parent=5 // pred_region
      // Predicated region
      $region49: #{tpu_custom_call.1} parent=47 // pred_check
        %p353 = pneg %p52
      $region50: #{tpu_custom_call.1} parent=47 // pred_check_branch
        %355 = sbr.rel (%p353) target = $region52
      $region51: #{tpu_custom_call.1} parent=47 // pred_region
        %s356 = smul.u32 8, %s26
        %p357 = scmp.lt.s32.totalorder %s25, 3
        %s358 = scalar_select %p357, %s25, 3
        %p359 = scmp.lt.s32.totalorder %s356, 7
        %s360 = scalar_select %p359, %s356, 7
        %s361 = smul.addr %s358, 8
        %s362 = sadd.s32 %s360, %s361
        %s363 = smul.addr %s362, 8
        %s364 = scalar_lea.vmem %s0, %s363
        %s365 = smul.u32 8, %s26
      $region52: #{tpu_custom_call.1} parent=47 // pred_fallthru
        _
      // Predicated region
      $region53: #{tpu_custom_call.1} parent=47 // pred_check
        %p366 = pneg %p80
      $region54: #{tpu_custom_call.1} parent=47 // pred_check_branch
        %368 = sbr.rel (%p366) target = $region56
      $region55: #{tpu_custom_call.1} parent=47 // pred_region
        %s369 = smul.u32 8, %s26
        %p370 = scmp.lt.s32.totalorder %s25, 3
        %s371 = scalar_select %p370, %s25, 3
        %p372 = scmp.lt.s32.totalorder %s369, 7
        %s373 = scalar_select %p372, %s369, 7
        %s374 = smul.addr %s371, 8
        %s375 = sadd.s32 %s373, %s374
        %s376 = smul.addr %s375, 8
        %s377 = scalar_lea.vmem %s1, %s376
        %s378 = smul.u32 8, %s26
      $region56: #{tpu_custom_call.1} parent=47 // pred_fallthru
        _
    $region48: #{tpu_custom_call.1} parent=5 // pred_fallthru
      _
    %p379 = scmp.le.s32.totalorder 1, %s18
    %p380 = scmp.lt.s32.totalorder %s18, 5
    %p381 = pnand %p379, %p380
    %p382 = pneg %p381
    // Predicated region
    $region57: #{tpu_custom_call.1} parent=5 // pred_check
      _
    $region58: #{tpu_custom_call.1} parent=5 // pred_check_branch
      %384 = sbr.rel (%p381) target = $region60
    $region59: #{tpu_custom_call.1} parent=5 // pred_region
      %s385 = ssub.s32 %s18, 1
      %s386 = smul.u32 8, %s28
      %p387 = scmp.lt.s32.totalorder %s27, 3
      %s388 = scalar_select %p387, %s27, 3
      %p389 = scmp.lt.s32.totalorder %s386, 7
      %s390 = scalar_select %p389, %s386, 7
      %s391 = smul.addr %s388, 8
      %s392 = sadd.s32 %s390, %s391
      %s393 = smul.addr %s392, 8
      %s394 = scalar_lea.vmem %s0, %s393
      %p395 = pneg %p58
      %p396 = pneg %p55
      %s397 = smul.u32 8, %s28
      %p398 = scmp.lt.s32.totalorder %s27, 3
      %s399 = scalar_select %p398, %s27, 3
      %p400 = scmp.lt.s32.totalorder %s397, 7
      %s401 = scalar_select %p400, %s397, 7
      %s402 = smul.addr %s399, 8
      %s403 = sadd.s32 %s401, %s402
      %s404 = smul.addr %s403, 8
      %s405 = scalar_lea.vmem %s1, %s404
      %p406 = pneg %p86
      %p407 = pneg %p83
      %p408 = pneg %p107
      %p409 = pneg %p104
      %p410 = pneg %p128
      %p411 = pneg %p125
      %p412 = pneg %p149
      %p413 = pneg %p146
      %p414 = pneg %p170
      %p415 = pneg %p167
      %p416 = pneg %p191
      %p417 = pneg %p188
      %p418 = pneg %p212
      %p419 = pneg %p209
      %p420 = pneg %p233
      %p421 = pneg %p230
      %p422 = pneg %p254
      %p423 = pneg %p251
      %p424 = pneg %p282
      %p425 = pneg %p279
      %s426 = smul.u32 8, %s28
      %p427 = scmp.lt.s32.totalorder %s27, 3
      %s428 = scalar_select %p427, %s27, 3
      %p429 = scmp.lt.s32.totalorder %s426, 7
      %s430 = scalar_select %p429, %s426, 7
      %s431 = smul.addr %s428, 16
      %s432 = sadd.s32 %s430, %s431
      %s433 = smul.addr %s432, 4
      %s434 = scalar_lea.vmem %s10, %s433
      %p435 = pneg %p310
      %p436 = pneg %p307
      %s437 = smul.u32 8, %s28
      %p438 = scmp.lt.s32.totalorder %s27, 3
      %s439 = scalar_select %p438, %s27, 3
      %p440 = scmp.lt.s32.totalorder %s437, 7
      %s441 = scalar_select %p440, %s437, 7
      %s442 = smul.addr %s439, 16
      %s443 = sadd.s32 %s441, %s442
      %s444 = smul.addr %s443, 4
      %s445 = scalar_lea.vmem %s11, %s444
      %s446 = smul.u32 8, %s28
      %p447 = scmp.lt.s32.totalorder %s27, 3
      %s448 = scalar_select %p447, %s27, 3
      %p449 = scmp.lt.s32.totalorder %s446, 7
      %s450 = scalar_select %p449, %s446, 7
      %s451 = smul.addr %s448, 8
      %s452 = sadd.s32 %s450, %s451
      %s453 = smul.addr %s452, 8
      %s454 = scalar_lea.vmem %s0, %s453
      %s455 = smul.u32 8, %s28
      %s456 = smul.u32 8, %s28
      %p457 = scmp.lt.s32.totalorder %s27, 3
      %s458 = scalar_select %p457, %s27, 3
      %p459 = scmp.lt.s32.totalorder %s456, 7
      %s460 = scalar_select %p459, %s456, 7
      %s461 = smul.addr %s458, 8
      %s462 = sadd.s32 %s460, %s461
      %s463 = smul.addr %s462, 8
      %s464 = scalar_lea.vmem %s1, %s463
      %s465 = smul.u32 8, %s28
      %s466 = smul.u32 8, %s28
      %p467 = scmp.lt.s32.totalorder %s27, 3
      %s468 = scalar_select %p467, %s27, 3
      %p469 = scmp.lt.s32.totalorder %s466, 7
      %s470 = scalar_select %p469, %s466, 7
      %s471 = smul.addr %s468, 16
      %s472 = sadd.s32 %s470, %s471
      %s473 = smul.addr %s472, 4
      %s474 = scalar_lea.vmem %s10, %s473
      %s475 = smul.u32 8, %s28
      %s476 = smul.u32 8, %s28
      %p477 = scmp.lt.s32.totalorder %s27, 3
      %s478 = scalar_select %p477, %s27, 3
      %p479 = scmp.lt.s32.totalorder %s476, 7
      %s480 = scalar_select %p479, %s476, 7
      %s481 = smul.addr %s478, 16
      %s482 = sadd.s32 %s480, %s481
      %s483 = smul.addr %s482, 4
      %s484 = scalar_lea.vmem %s11, %s483
      %s485 = smul.u32 8, %s28
      %v487 = vld [vmem:[%s454] sm:$0xff]
      %v488 = vld [vmem:[%s454 + $0x8] sm:$0xff]
      %v489 = vld [vmem:[%s454 + $0x10] sm:$0xff]
      %v490 = vld [vmem:[%s454 + $0x18] sm:$0xff]
      %v491 = vld [vmem:[%s454 + $0x20] sm:$0xff]
      %v492 = vld [vmem:[%s454 + $0x28] sm:$0xff]
      %v493 = vld [vmem:[%s454 + $0x30] sm:$0xff]
      %v494 = vld [vmem:[%s454 + $0x38] sm:$0xff]
      %v495 = vpack.c.bf16 %v488, %v487
      %v496 = vpack.c.bf16 %v490, %v489
      %v497 = vpack.c.bf16 %v492, %v491
      %v498 = vpack.c.bf16 %v494, %v493
      %v499 = vld [vmem:[%s2] sm:$0x3]
      %v500 = vld [vmem:[%s3] sm:$0x1]
      %v502 = vlaneseq
      %v503 = vshrl.u32 %v502, 7
      %v504 = vsub.s32 0, %v503
      %v505 = vrot.slane %v500, %v504
      %vm507 = vcmask 31744
      %v509 = vsel %vm507, %v495, 0
      %v512 = vsel %vm507, %v496, 0
      %v515 = vsel %vm507, %v497, 0
      %v518 = vsel %vm507, %v498, 0
      %vm520 = vcmask 1041408
      %v522 = vsel %vm520, %v499, 0
      %524 = vmatprep.subr.bf16.mxu0 0
      %525 = vmatpush1.bf16.msra.mxu0 %v522
      %526 = vmatprep.subr.bf16.mxu0 0
      %527 = vmatpush1.bf16.msra.mxu0 0
      %528 = vmatprep.subr.bf16.mxu0 0
      %529 = vmatpush1.bf16.msra.mxu0 0
      %530 = vmatprep.subr.bf16.mxu0 0
      %531 = vmatpush1.bf16.msra.mxu0 0
      %532 = vmatprep.subr.bf16.mxu0 0
      %533 = vmatpush1.bf16.msra.mxu0 0
      %534 = vmatprep.subr.bf16.mxu0 0
      %535 = vmatpush1.bf16.msra.mxu0 0
      %536 = vmatprep.subr.bf16.mxu0 0
      %537 = vmatpush1.bf16.msra.mxu0 0
      %538 = vmatprep.subr.bf16.mxu0 0
      %539 = vmatpush1.bf16.msra.mxu0 0
      %540 = vmatprep.subr.bf16.mxu0 0
      %541 = vmatpush1.bf16.msra.mxu0 0
      %542 = vmatprep.subr.bf16.mxu0 0
      %543 = vmatpush1.bf16.msra.mxu0 0
      %544 = vmatprep.subr.bf16.mxu0 0
      %545 = vmatpush1.bf16.msra.mxu0 0
      %546 = vmatprep.subr.bf16.mxu0 0
      %547 = vmatpush1.bf16.msra.mxu0 0
      %548 = vmatprep.subr.bf16.mxu0 0
      %549 = vmatpush1.bf16.msra.mxu0 0
      %550 = vmatprep.subr.bf16.mxu0 0
      %551 = vmatpush1.bf16.msra.mxu0 0
      %552 = vmatprep.subr.bf16.mxu0 0
      %553 = vmatpush1.bf16.msra.mxu0 0
      %554 = vmatprep.subr.bf16.mxu0 0
      %555 = vmatpush1.bf16.msra.mxu0 0
      %556 = vmatprep.mubr.bf16.mxu0 0
      %557 = vmatmul.mubr.bf16.gmra.mrb[0].mxu0 %v509
      %v558 = vpop.f32.mrb[0].mxu0
      %v559 = vadd.f32 %v505, %v558
      %v560 = vpop.f32.mrb[0].mxu0
      %v561 = vpop.f32.mrb[0].mxu0
      %v562 = vadd.f32 %v505, %v561
      %v563 = vpop.f32.mrb[0].mxu0
      %564 = vmatprep.mubr.bf16.mxu0 0
      %565 = vmatmul.mubr.bf16.gmra.mrb[0].mxu0 %v512
      %v566 = vpop.f32.mrb[0].mxu0
      %v567 = vadd.f32 %v505, %v566
      %v568 = vpop.f32.mrb[0].mxu0
      %v569 = vpop.f32.mrb[0].mxu0
      %v570 = vadd.f32 %v505, %v569
      %v571 = vpop.f32.mrb[0].mxu0
      %572 = vmatprep.mubr.bf16.mxu0 0
      %573 = vmatmul.mubr.bf16.gmra.mrb[0].mxu0 %v515
      %v574 = vpop.f32.mrb[0].mxu0
      %v575 = vadd.f32 %v505, %v574
      %v576 = vpop.f32.mrb[0].mxu0
      %v577 = vpop.f32.mrb[0].mxu0
      %v578 = vadd.f32 %v505, %v577
      %v579 = vpop.f32.mrb[0].mxu0
      %580 = vmatprep.mubr.bf16.mxu0 0
      %581 = vmatmul.mubr.bf16.gmra.mrb[0].mxu0 %v518
      %v582 = vpop.f32.mrb[0].mxu0
      %v583 = vadd.f32 %v505, %v582
      %v584 = vpop.f32.mrb[0].mxu0
      %v585 = vpop.f32.mrb[0].mxu0
      %v586 = vadd.f32 %v505, %v585
      %v587 = vpop.f32.mrb[0].mxu0
      %588 = vdwg.mxu0
      %v589 = vmax.f32 %v559, 0.0
      %v590 = vmax.f32 %v562, 0.0
      %v591 = vmax.f32 %v567, 0.0
      %v592 = vmax.f32 %v570, 0.0
      %v593 = vmax.f32 %v575, 0.0
      %v594 = vmax.f32 %v578, 0.0
      %v595 = vmax.f32 %v583, 0.0
      %v596 = vmax.f32 %v586, 0.0
      %v597 = vld [vmem:[%s464] sm:$0xff]
      %v598 = vld [vmem:[%s464 + $0x8] sm:$0xff]
      %v599 = vld [vmem:[%s464 + $0x10] sm:$0xff]
      %v600 = vld [vmem:[%s464 + $0x18] sm:$0xff]
      %v601 = vld [vmem:[%s464 + $0x20] sm:$0xff]
      %v602 = vld [vmem:[%s464 + $0x28] sm:$0xff]
      %v603 = vld [vmem:[%s464 + $0x30] sm:$0xff]
      %v604 = vld [vmem:[%s464 + $0x38] sm:$0xff]
      %v605 = vadd.f32 %v589, %v597
      %v606 = vadd.f32 %v590, %v598
      %v607 = vadd.f32 %v591, %v599
      %v608 = vadd.f32 %v592, %v600
      %v609 = vadd.f32 %v593, %v601
      %v610 = vadd.f32 %v594, %v602
      %v611 = vadd.f32 %v595, %v603
      %v612 = vadd.f32 %v596, %v604
      %v613 = vld [vmem:[%s4] sm:$0x3]
      %v614 = vld [vmem:[%s5] sm:$0x3]
      %vm615 = vcmask 130048
      %v616 = vsel %vm615, %v605, 0.0
      %617 = vadd.xlane.f32.xlu0 %v616
      %v618 = vpop.xlane.xlu0 %617
      %v619 = vsel %vm615, %v606, 0.0
      %620 = vadd.xlane.f32.xlu0 %v619
      %v621 = vpop.xlane.xlu0 %620
      %v622 = vsel %vm615, %v607, 0.0
      %623 = vadd.xlane.f32.xlu0 %v622
      %v624 = vpop.xlane.xlu0 %623
      %v625 = vsel %vm615, %v608, 0.0
      %626 = vadd.xlane.f32.xlu0 %v625
      %v627 = vpop.xlane.xlu0 %626
      %v628 = vsel %vm615, %v609, 0.0
      %629 = vadd.xlane.f32.xlu0 %v628
      %v630 = vpop.xlane.xlu0 %629
      %v631 = vsel %vm615, %v610, 0.0
      %632 = vadd.xlane.f32.xlu0 %v631
      %v633 = vpop.xlane.xlu0 %632
      %v634 = vsel %vm615, %v611, 0.0
      %635 = vadd.xlane.f32.xlu0 %v634
      %v636 = vpop.xlane.xlu0 %635
      %v637 = vsel %vm615, %v612, 0.0
      %638 = vadd.xlane.f32.xlu0 %v637
      %v639 = vpop.xlane.xlu0 %638
      %v640 = vrcp.pop 16.0
      %v641 = vmul.f32 %v618, %v640
      %v642 = vmul.f32 %v621, %v640
      %v643 = vmul.f32 %v624, %v640
      %v644 = vmul.f32 %v627, %v640
      %v645 = vmul.f32 %v630, %v640
      %v646 = vmul.f32 %v633, %v640
      %v647 = vmul.f32 %v636, %v640
      %v648 = vmul.f32 %v639, %v640
      %v649 = vsub.f32 %v605, %v641
      %v650 = vsub.f32 %v606, %v642
      %v651 = vsub.f32 %v607, %v643
      %v652 = vsub.f32 %v608, %v644
      %v653 = vsub.f32 %v609, %v645
      %v654 = vsub.f32 %v610, %v646
      %v655 = vsub.f32 %v611, %v647
      %v656 = vsub.f32 %v612, %v648
      %v657 = vmul.f32 %v649, %v649
      %v658 = vmul.f32 %v650, %v650
      %v659 = vmul.f32 %v651, %v651
      %v660 = vmul.f32 %v652, %v652
      %v661 = vmul.f32 %v653, %v653
      %v662 = vmul.f32 %v654, %v654
      %v663 = vmul.f32 %v655, %v655
      %v664 = vmul.f32 %v656, %v656
      %v665 = vsel %vm615, %v657, 0.0
      %666 = vadd.xlane.f32.xlu0 %v665
      %v667 = vpop.xlane.xlu0 %666
      %v668 = vsel %vm615, %v658, 0.0
      %669 = vadd.xlane.f32.xlu0 %v668
      %v670 = vpop.xlane.xlu0 %669
      %v671 = vsel %vm615, %v659, 0.0
      %672 = vadd.xlane.f32.xlu0 %v671
      %v673 = vpop.xlane.xlu0 %672
      %v674 = vsel %vm615, %v660, 0.0
      %675 = vadd.xlane.f32.xlu0 %v674
      %v676 = vpop.xlane.xlu0 %675
      %v677 = vsel %vm615, %v661, 0.0
      %678 = vadd.xlane.f32.xlu0 %v677
      %v679 = vpop.xlane.xlu0 %678
      %v680 = vsel %vm615, %v662, 0.0
      %681 = vadd.xlane.f32.xlu0 %v680
      %v682 = vpop.xlane.xlu0 %681
      %v683 = vsel %vm615, %v663, 0.0
      %684 = vadd.xlane.f32.xlu0 %v683
      %v685 = vpop.xlane.xlu0 %684
      %v686 = vsel %vm615, %v664, 0.0
      %687 = vadd.xlane.f32.xlu0 %v686
      %v688 = vpop.xlane.xlu0 %687
      %v689 = vmul.f32 %v667, %v640
      %v690 = vmul.f32 %v670, %v640
      %v691 = vmul.f32 %v673, %v640
      %v692 = vmul.f32 %v676, %v640
      %v693 = vmul.f32 %v679, %v640
      %v694 = vmul.f32 %v682, %v640
      %v695 = vmul.f32 %v685, %v640
      %v696 = vmul.f32 %v688, %v640
      %v697 = vadd.f32 %v689, 1e-05
      %v698 = vadd.f32 %v690, 1e-05
      %v699 = vadd.f32 %v691, 1e-05
      %v700 = vadd.f32 %v692, 1e-05
      %v701 = vadd.f32 %v693, 1e-05
      %v702 = vadd.f32 %v694, 1e-05
      %v703 = vadd.f32 %v695, 1e-05
      %v704 = vadd.f32 %v696, 1e-05
      %v705 = vrsqrt.pop %v697
      %v706 = vrsqrt.pop %v698
      %v707 = vrsqrt.pop %v699
      %v708 = vrsqrt.pop %v700
      %v709 = vrsqrt.pop %v701
      %v710 = vrsqrt.pop %v702
      %v711 = vrsqrt.pop %v703
      %v712 = vrsqrt.pop %v704
      %v713 = vmul.f32 %v649, %v705
      %v714 = vmul.f32 %v650, %v706
      %v715 = vmul.f32 %v651, %v707
      %v716 = vmul.f32 %v652, %v708
      %v717 = vmul.f32 %v653, %v709
      %v718 = vmul.f32 %v654, %v710
      %v719 = vmul.f32 %v655, %v711
      %v720 = vmul.f32 %v656, %v712
      %v721 = vlaneseq
      %v722 = vshrl.u32 %v721, 7
      %v723 = vsub.s32 0, %v722
      %v724 = vrot.slane %v613, %v723
      %v725 = vmul.f32 %v713, %v724
      %v726 = vmul.f32 %v714, %v724
      %v727 = vmul.f32 %v715, %v724
      %v728 = vmul.f32 %v716, %v724
      %v729 = vmul.f32 %v717, %v724
      %v730 = vmul.f32 %v718, %v724
      %v731 = vmul.f32 %v719, %v724
      %v732 = vmul.f32 %v720, %v724
      %v733 = vlaneseq
      %v734 = vshrl.u32 %v733, 7
      %v735 = vsub.s32 0, %v734
      %v736 = vrot.slane %v614, %v735
      %v737 = vadd.f32 %v725, %v736
      %v738 = vadd.f32 %v726, %v736
      %v739 = vadd.f32 %v727, %v736
      %v740 = vadd.f32 %v728, %v736
      %v741 = vadd.f32 %v729, %v736
      %v742 = vadd.f32 %v730, %v736
      %v743 = vadd.f32 %v731, %v736
      %v744 = vadd.f32 %v732, %v736
      %v745 = vpack.c.bf16 %v738, %v737
      %v746 = vpack.c.bf16 %v740, %v739
      %v747 = vpack.c.bf16 %v742, %v741
      %v748 = vpack.c.bf16 %v744, %v743
      %757 = vrot.lane.b32.xlu0 %v589, 112
      %v758 = vpop.permute.xlu0 %757
      %759 = vrot.lane.b32.xlu0 %v590, 112
      %v760 = vpop.permute.xlu0 %759
      %761 = vrot.lane.b32.xlu0 %v591, 112
      %v762 = vpop.permute.xlu0 %761
      %763 = vrot.lane.b32.xlu0 %v592, 112
      %v764 = vpop.permute.xlu0 %763
      %765 = vrot.lane.b32.xlu0 %v593, 112
      %v766 = vpop.permute.xlu0 %765
      %767 = vrot.lane.b32.xlu0 %v594, 112
      %v768 = vpop.permute.xlu0 %767
      %769 = vrot.lane.b32.xlu0 %v595, 112
      %v770 = vpop.permute.xlu0 %769
      %771 = vrot.lane.b32.xlu0 %v596, 112
      %v772 = vpop.permute.xlu0 %771
      %v781 = vsel %vm615, %v758, 0.0
      %782 = vadd.xlane.f32.xlu0 %v781
      %v783 = vpop.xlane.xlu0 %782
      %v784 = vsel %vm615, %v760, 0.0
      %785 = vadd.xlane.f32.xlu0 %v784
      %v786 = vpop.xlane.xlu0 %785
      %v787 = vsel %vm615, %v762, 0.0
      %788 = vadd.xlane.f32.xlu0 %v787
      %v789 = vpop.xlane.xlu0 %788
      %v790 = vsel %vm615, %v764, 0.0
      %791 = vadd.xlane.f32.xlu0 %v790
      %v792 = vpop.xlane.xlu0 %791
      %v793 = vsel %vm615, %v766, 0.0
      %794 = vadd.xlane.f32.xlu0 %v793
      %v795 = vpop.xlane.xlu0 %794
      %v796 = vsel %vm615, %v768, 0.0
      %797 = vadd.xlane.f32.xlu0 %v796
      %v798 = vpop.xlane.xlu0 %797
      %v799 = vsel %vm615, %v770, 0.0
      %800 = vadd.xlane.f32.xlu0 %v799
      %v801 = vpop.xlane.xlu0 %800
      %v802 = vsel %vm615, %v772, 0.0
      %803 = vadd.xlane.f32.xlu0 %v802
      %v804 = vpop.xlane.xlu0 %803
      %v805 = vmul.f32 %v783, %v640
      %v806 = vmul.f32 %v786, %v640
      %v807 = vmul.f32 %v789, %v640
      %v808 = vmul.f32 %v792, %v640
      %v809 = vmul.f32 %v795, %v640
      %v810 = vmul.f32 %v798, %v640
      %v811 = vmul.f32 %v801, %v640
      %v812 = vmul.f32 %v804, %v640
      %v813 = vsub.f32 %v589, %v805
      %v814 = vsub.f32 %v590, %v806
      %v815 = vsub.f32 %v591, %v807
      %v816 = vsub.f32 %v592, %v808
      %v817 = vsub.f32 %v593, %v809
      %v818 = vsub.f32 %v594, %v810
      %v819 = vsub.f32 %v595, %v811
      %v820 = vsub.f32 %v596, %v812
      %v821 = vmul.f32 %v813, %v813
      %v822 = vmul.f32 %v814, %v814
      %v823 = vmul.f32 %v815, %v815
      %v824 = vmul.f32 %v816, %v816
      %v825 = vmul.f32 %v817, %v817
      %v826 = vmul.f32 %v818, %v818
      %v827 = vmul.f32 %v819, %v819
      %v828 = vmul.f32 %v820, %v820
      %837 = vrot.lane.b32.xlu0 %v821, 112
      %v838 = vpop.permute.xlu0 %837
      %839 = vrot.lane.b32.xlu0 %v822, 112
      %v840 = vpop.permute.xlu0 %839
      %841 = vrot.lane.b32.xlu0 %v823, 112
      %v842 = vpop.permute.xlu0 %841
      %843 = vrot.lane.b32.xlu0 %v824, 112
      %v844 = vpop.permute.xlu0 %843
      %845 = vrot.lane.b32.xlu0 %v825, 112
      %v846 = vpop.permute.xlu0 %845
      %847 = vrot.lane.b32.xlu0 %v826, 112
      %v848 = vpop.permute.xlu0 %847
      %849 = vrot.lane.b32.xlu0 %v827, 112
      %v850 = vpop.permute.xlu0 %849
      %851 = vrot.lane.b32.xlu0 %v828, 112
      %v852 = vpop.permute.xlu0 %851
      %v861 = vsel %vm615, %v838, 0.0
      %862 = vadd.xlane.f32.xlu0 %v861
      %v863 = vpop.xlane.xlu0 %862
      %v864 = vsel %vm615, %v840, 0.0
      %865 = vadd.xlane.f32.xlu0 %v864
      %v866 = vpop.xlane.xlu0 %865
      %v867 = vsel %vm615, %v842, 0.0
      %868 = vadd.xlane.f32.xlu0 %v867
      %v869 = vpop.xlane.xlu0 %868
      %v870 = vsel %vm615, %v844, 0.0
      %871 = vadd.xlane.f32.xlu0 %v870
      %v872 = vpop.xlane.xlu0 %871
      %v873 = vsel %vm615, %v846, 0.0
      %874 = vadd.xlane.f32.xlu0 %v873
      %v875 = vpop.xlane.xlu0 %874
      %v876 = vsel %vm615, %v848, 0.0
      %877 = vadd.xlane.f32.xlu0 %v876
      %v878 = vpop.xlane.xlu0 %877
      %v879 = vsel %vm615, %v850, 0.0
      %880 = vadd.xlane.f32.xlu0 %v879
      %v881 = vpop.xlane.xlu0 %880
      %v882 = vsel %vm615, %v852, 0.0
      %883 = vadd.xlane.f32.xlu0 %v882
      %v884 = vpop.xlane.xlu0 %883
      %v885 = vmul.f32 %v863, %v640
      %v886 = vmul.f32 %v866, %v640
      %v887 = vmul.f32 %v869, %v640
      %v888 = vmul.f32 %v872, %v640
      %v889 = vmul.f32 %v875, %v640
      %v890 = vmul.f32 %v878, %v640
      %v891 = vmul.f32 %v881, %v640
      %v892 = vmul.f32 %v884, %v640
      %v893 = vadd.f32 %v885, 1e-05
      %v894 = vadd.f32 %v886, 1e-05
      %v895 = vadd.f32 %v887, 1e-05
      %v896 = vadd.f32 %v888, 1e-05
      %v897 = vadd.f32 %v889, 1e-05
      %v898 = vadd.f32 %v890, 1e-05
      %v899 = vadd.f32 %v891, 1e-05
      %v900 = vadd.f32 %v892, 1e-05
      %v901 = vrsqrt.pop %v893
      %v902 = vrsqrt.pop %v894
      %v903 = vrsqrt.pop %v895
      %v904 = vrsqrt.pop %v896
      %v905 = vrsqrt.pop %v897
      %v906 = vrsqrt.pop %v898
      %v907 = vrsqrt.pop %v899
      %v908 = vrsqrt.pop %v900
      %v909 = vmul.f32 %v813, %v901
      %v910 = vmul.f32 %v814, %v902
      %v911 = vmul.f32 %v815, %v903
      %v912 = vmul.f32 %v816, %v904
      %v913 = vmul.f32 %v817, %v905
      %v914 = vmul.f32 %v818, %v906
      %v915 = vmul.f32 %v819, %v907
      %v916 = vmul.f32 %v820, %v908
      %v917 = vlaneseq
      %v918 = vshrl.u32 %v917, 7
      %v919 = vsub.s32 1, %v918
      %v920 = vrot.slane %v613, %v919
      %922 = vrot.lane.b32.xlu0 %v920, 16
      %v923 = vpop.permute.xlu0 %922
      %v925 = vmul.f32 %v909, %v923
      %v926 = vmul.f32 %v910, %v923
      %v927 = vmul.f32 %v911, %v923
      %v928 = vmul.f32 %v912, %v923
      %v929 = vmul.f32 %v913, %v923
      %v930 = vmul.f32 %v914, %v923
      %v931 = vmul.f32 %v915, %v923
      %v932 = vmul.f32 %v916, %v923
      %v933 = vlaneseq
      %v934 = vshrl.u32 %v933, 7
      %v935 = vsub.s32 1, %v934
      %v936 = vrot.slane %v614, %v935
      %938 = vrot.lane.b32.xlu0 %v936, 16
      %v939 = vpop.permute.xlu0 %938
      %v941 = vadd.f32 %v925, %v939
      %v942 = vadd.f32 %v926, %v939
      %v943 = vadd.f32 %v927, %v939
      %v944 = vadd.f32 %v928, %v939
      %v945 = vadd.f32 %v929, %v939
      %v946 = vadd.f32 %v930, %v939
      %v947 = vadd.f32 %v931, %v939
      %v948 = vadd.f32 %v932, %v939
      %v949 = vpack.c.bf16 %v942, %v941
      %v950 = vpack.c.bf16 %v944, %v943
      %v951 = vpack.c.bf16 %v946, %v945
      %v952 = vpack.c.bf16 %v948, %v947
      %v953 = vld [vmem:[%s6] sm:$0xf]
      %v954 = vld [vmem:[%s6 + $0x4] sm:$0xf]
      %v955 = vld [vmem:[%s7] sm:$0x1]
      %v957 = vlaneseq
      %v958 = vshrl.u32 %v957, 7
      %v959 = vsub.s32 0, %v958
      %v960 = vrot.slane %v955, %v959
      %v964 = vunpack.c.l.b16 %v953
      %v965 = vunpack.c.l.b16 %v954
      %v966 = vpack.c.b16 %v965, %v964
      %v969 = vsel %vm615, %v745, 0
      %v972 = vsel %vm615, %v746, 0
      %v975 = vsel %vm615, %v747, 0
      %v978 = vsel %vm615, %v748, 0
      %980 = vmatprep.subr.bf16.mxu0 0
      %981 = vmatpush1.bf16.msra.mxu0 %v966
      %982 = vmatprep.subr.bf16.mxu0 0
      %983 = vmatpush1.bf16.msra.mxu0 0
      %984 = vmatprep.subr.bf16.mxu0 0
      %985 = vmatpush1.bf16.msra.mxu0 0
      %986 = vmatprep.subr.bf16.mxu0 0
      %987 = vmatpush1.bf16.msra.mxu0 0
      %988 = vmatprep.subr.bf16.mxu0 0
      %989 = vmatpush1.bf16.msra.mxu0 0
      %990 = vmatprep.subr.bf16.mxu0 0
      %991 = vmatpush1.bf16.msra.mxu0 0
      %992 = vmatprep.subr.bf16.mxu0 0
      %993 = vmatpush1.bf16.msra.mxu0 0
      %994 = vmatprep.subr.bf16.mxu0 0
      %995 = vmatpush1.bf16.msra.mxu0 0
      %996 = vmatprep.subr.bf16.mxu0 0
      %997 = vmatpush1.bf16.msra.mxu0 0
      %998 = vmatprep.subr.bf16.mxu0 0
      %999 = vmatpush1.bf16.msra.mxu0 0
      %1000 = vmatprep.subr.bf16.mxu0 0
      %1001 = vmatpush1.bf16.msra.mxu0 0
      %1002 = vmatprep.subr.bf16.mxu0 0
      %1003 = vmatpush1.bf16.msra.mxu0 0
      %1004 = vmatprep.subr.bf16.mxu0 0
      %1005 = vmatpush1.bf16.msra.mxu0 0
      %1006 = vmatprep.subr.bf16.mxu0 0
      %1007 = vmatpush1.bf16.msra.mxu0 0
      %1008 = vmatprep.subr.bf16.mxu0 0
      %1009 = vmatpush1.bf16.msra.mxu0 0
      %1010 = vmatprep.subr.bf16.mxu0 0
      %1011 = vmatpush1.bf16.msra.mxu0 0
      %1012 = vmatprep.mubr.bf16.mxu0 0
      %1013 = vmatmul.mubr.bf16.gmra.mrb[0].mxu0 %v969
      %v1014 = vpop.f32.mrb[0].mxu0
      %v1015 = vadd.f32 %v960, %v1014
      %v1016 = vpop.f32.mrb[0].mxu0
      %v1017 = vpop.f32.mrb[0].mxu0
      %v1018 = vadd.f32 %v960, %v1017
      %v1019 = vpop.f32.mrb[0].mxu0
      %1020 = vmatprep.mubr.bf16.mxu0 0
      %1021 = vmatmul.mubr.bf16.gmra.mrb[0].mxu0 %v972
      %v1022 = vpop.f32.mrb[0].mxu0
      %v1023 = vadd.f32 %v960, %v1022
      %v1024 = vpop.f32.mrb[0].mxu0
      %v1025 = vpop.f32.mrb[0].mxu0
      %v1026 = vadd.f32 %v960, %v1025
      %v1027 = vpop.f32.mrb[0].mxu0
      %1028 = vmatprep.mubr.bf16.mxu0 0
      %1029 = vmatmul.mubr.bf16.gmra.mrb[0].mxu0 %v975
      %v1030 = vpop.f32.mrb[0].mxu0
      %v1031 = vadd.f32 %v960, %v1030
      %v1032 = vpop.f32.mrb[0].mxu0
      %v1033 = vpop.f32.mrb[0].mxu0
      %v1034 = vadd.f32 %v960, %v1033
      %v1035 = vpop.f32.mrb[0].mxu0
      %1036 = vmatprep.mubr.bf16.mxu0 0
      %1037 = vmatmul.mubr.bf16.gmra.mrb[0].mxu0 %v978
      %v1038 = vpop.f32.mrb[0].mxu0
      %v1039 = vadd.f32 %v960, %v1038
      %v1040 = vpop.f32.mrb[0].mxu0
      %v1041 = vpop.f32.mrb[0].mxu0
      %v1042 = vadd.f32 %v960, %v1041
      %v1043 = vpop.f32.mrb[0].mxu0
      %1044 = vdwg.mxu0
      %v1045 = vpack.c.bf16 %v1018, %v1015
      %v1046 = vpack.c.bf16 %v1026, %v1023
      %v1047 = vpack.c.bf16 %v1034, %v1031
      %v1048 = vpack.c.bf16 %v1042, %v1039
      %v1053 = vunpack.c.l.b16 %v1045
      %v1054 = vunpack.c.h.b16 %v1045
      %v1055 = vunpack.c.l.b16 %v1046
      %v1056 = vunpack.c.h.b16 %v1046
      %v1057 = vunpack.c.l.b16 %v1047
      %v1058 = vunpack.c.h.b16 %v1047
      %v1059 = vunpack.c.l.b16 %v1048
      %v1060 = vunpack.c.h.b16 %v1048
      %v1061 = vpack.c.b16 %v1053, %v1053
      %v1062 = vpack.c.b16 %v1054, %v1054
      %v1063 = vpack.c.b16 %v1055, %v1055
      %v1064 = vpack.c.b16 %v1056, %v1056
      %v1065 = vpack.c.b16 %v1057, %v1057
      %v1066 = vpack.c.b16 %v1058, %v1058
      %v1067 = vpack.c.b16 %v1059, %v1059
      %v1068 = vpack.c.b16 %v1060, %v1060
      %vm1077 = vcmask 60416
      %1078 = vst.msk [vmem:[%s474] sm:$0xf] %vm1077, %v1061
      %1079 = vst.msk [vmem:[%s474 + $0x4] sm:$0xf] %vm1077, %v1062
      %1080 = vst.msk [vmem:[%s474 + $0x8] sm:$0xf] %vm1077, %v1063
      %1081 = vst.msk [vmem:[%s474 + $0xc] sm:$0xf] %vm1077, %v1064
      %1082 = vst.msk [vmem:[%s474 + $0x10] sm:$0xf] %vm1077, %v1065
      %1083 = vst.msk [vmem:[%s474 + $0x14] sm:$0xf] %vm1077, %v1066
      %1084 = vst.msk [vmem:[%s474 + $0x18] sm:$0xf] %vm1077, %v1067
      %1085 = vst.msk [vmem:[%s474 + $0x1c] sm:$0xf] %vm1077, %v1068
      %v1086 = vld [vmem:[%s8] sm:$0xf]
      %v1087 = vld [vmem:[%s8 + $0x4] sm:$0xf]
      %v1088 = vld [vmem:[%s9] sm:$0x1]
      %v1090 = vlaneseq
      %v1091 = vshrl.u32 %v1090, 7
      %v1092 = vsub.s32 0, %v1091
      %v1093 = vrot.slane %v1088, %v1092
      %1099 = vrot.lane.b32.xlu0 %v949, 112
      %v1100 = vpop.permute.xlu0 %1099
      %1101 = vrot.lane.b32.xlu0 %v950, 112
      %v1102 = vpop.permute.xlu0 %1101
      %1103 = vrot.lane.b32.xlu0 %v951, 112
      %v1104 = vpop.permute.xlu0 %1103
      %1105 = vrot.lane.b32.xlu0 %v952, 112
      %v1106 = vpop.permute.xlu0 %1105
      %v1109 = vunpack.c.l.b16 %v1086
      %v1110 = vunpack.c.l.b16 %v1087
      %v1111 = vpack.c.b16 %v1110, %v1109
      %v1114 = vsel %vm615, %v1100, 0
      %v1117 = vsel %vm615, %v1102, 0
      %v1120 = vsel %vm615, %v1104, 0
      %v1123 = vsel %vm615, %v1106, 0
      %1125 = vmatprep.subr.bf16.mxu0 0
      %1126 = vmatpush1.bf16.msra.mxu0 %v1111
      %1127 = vmatprep.subr.bf16.mxu0 0
      %1128 = vmatpush1.bf16.msra.mxu0 0
      %1129 = vmatprep.subr.bf16.mxu0 0
      %1130 = vmatpush1.bf16.msra.mxu0 0
      %1131 = vmatprep.subr.bf16.mxu0 0
      %1132 = vmatpush1.bf16.msra.mxu0 0
      %1133 = vmatprep.subr.bf16.mxu0 0
      %1134 = vmatpush1.bf16.msra.mxu0 0
      %1135 = vmatprep.subr.bf16.mxu0 0
      %1136 = vmatpush1.bf16.msra.mxu0 0
      %1137 = vmatprep.subr.bf16.mxu0 0
      %1138 = vmatpush1.bf16.msra.mxu0 0
      %1139 = vmatprep.subr.bf16.mxu0 0
      %1140 = vmatpush1.bf16.msra.mxu0 0
      %1141 = vmatprep.subr.bf16.mxu0 0
      %1142 = vmatpush1.bf16.msra.mxu0 0
      %1143 = vmatprep.subr.bf16.mxu0 0
      %1144 = vmatpush1.bf16.msra.mxu0 0
      %1145 = vmatprep.subr.bf16.mxu0 0
      %1146 = vmatpush1.bf16.msra.mxu0 0
      %1147 = vmatprep.subr.bf16.mxu0 0
      %1148 = vmatpush1.bf16.msra.mxu0 0
      %1149 = vmatprep.subr.bf16.mxu0 0
      %1150 = vmatpush1.bf16.msra.mxu0 0
      %1151 = vmatprep.subr.bf16.mxu0 0
      %1152 = vmatpush1.bf16.msra.mxu0 0
      %1153 = vmatprep.subr.bf16.mxu0 0
      %1154 = vmatpush1.bf16.msra.mxu0 0
      %1155 = vmatprep.subr.bf16.mxu0 0
      %1156 = vmatpush1.bf16.msra.mxu0 0
      %1157 = vmatprep.mubr.bf16.mxu0 0
      %1158 = vmatmul.mubr.bf16.gmra.mrb[0].mxu0 %v1114
      %v1159 = vpop.f32.mrb[0].mxu0
      %v1160 = vadd.f32 %v1093, %v1159
      %v1161 = vpop.f32.mrb[0].mxu0
      %v1162 = vpop.f32.mrb[0].mxu0
      %v1163 = vadd.f32 %v1093, %v1162
      %v1164 = vpop.f32.mrb[0].mxu0
      %1165 = vmatprep.mubr.bf16.mxu0 0
      %1166 = vmatmul.mubr.bf16.gmra.mrb[0].mxu0 %v1117
      %v1167 = vpop.f32.mrb[0].mxu0
      %v1168 = vadd.f32 %v1093, %v1167
      %v1169 = vpop.f32.mrb[0].mxu0
      %v1170 = vpop.f32.mrb[0].mxu0
      %v1171 = vadd.f32 %v1093, %v1170
      %v1172 = vpop.f32.mrb[0].mxu0
      %1173 = vmatprep.mubr.bf16.mxu0 0
      %1174 = vmatmul.mubr.bf16.gmra.mrb[0].mxu0 %v1120
      %v1175 = vpop.f32.mrb[0].mxu0
      %v1176 = vadd.f32 %v1093, %v1175
      %v1177 = vpop.f32.mrb[0].mxu0
      %v1178 = vpop.f32.mrb[0].mxu0
      %v1179 = vadd.f32 %v1093, %v1178
      %v1180 = vpop.f32.mrb[0].mxu0
      %1181 = vmatprep.mubr.bf16.mxu0 0
      %1182 = vmatmul.mubr.bf16.gmra.mrb[0].mxu0 %v1123
      %v1183 = vpop.f32.mrb[0].mxu0
      %v1184 = vadd.f32 %v1093, %v1183
      %v1185 = vpop.f32.mrb[0].mxu0
      %v1186 = vpop.f32.mrb[0].mxu0
      %v1187 = vadd.f32 %v1093, %v1186
      %v1188 = vpop.f32.mrb[0].mxu0
      %1189 = vdwg.mxu0
      %v1190 = vpack.c.bf16 %v1163, %v1160
      %v1191 = vpack.c.bf16 %v1171, %v1168
      %v1192 = vpack.c.bf16 %v1179, %v1176
      %v1193 = vpack.c.bf16 %v1187, %v1184
      %v1198 = vunpack.c.l.b16 %v1190
      %v1199 = vunpack.c.h.b16 %v1190
      %v1200 = vunpack.c.l.b16 %v1191
      %v1201 = vunpack.c.h.b16 %v1191
      %v1202 = vunpack.c.l.b16 %v1192
      %v1203 = vunpack.c.h.b16 %v1192
      %v1204 = vunpack.c.l.b16 %v1193
      %v1205 = vunpack.c.h.b16 %v1193
      %v1206 = vpack.c.b16 %v1198, %v1198
      %v1207 = vpack.c.b16 %v1199, %v1199
      %v1208 = vpack.c.b16 %v1200, %v1200
      %v1209 = vpack.c.b16 %v1201, %v1201
      %v1210 = vpack.c.b16 %v1202, %v1202
      %v1211 = vpack.c.b16 %v1203, %v1203
      %v1212 = vpack.c.b16 %v1204, %v1204
      %v1213 = vpack.c.b16 %v1205, %v1205
      %1222 = vst.msk [vmem:[%s484] sm:$0xf] %vm1077, %v1206
      %1223 = vst.msk [vmem:[%s484 + $0x4] sm:$0xf] %vm1077, %v1207
      %1224 = vst.msk [vmem:[%s484 + $0x8] sm:$0xf] %vm1077, %v1208
      %1225 = vst.msk [vmem:[%s484 + $0xc] sm:$0xf] %vm1077, %v1209
      %1226 = vst.msk [vmem:[%s484 + $0x10] sm:$0xf] %vm1077, %v1210
      %1227 = vst.msk [vmem:[%s484 + $0x14] sm:$0xf] %vm1077, %v1211
      %1228 = vst.msk [vmem:[%s484 + $0x18] sm:$0xf] %vm1077, %v1212
      %1229 = vst.msk [vmem:[%s484 + $0x1c] sm:$0xf] %vm1077, %v1213
      %s1230 = scalar_lea.vmem %s6, 8
      %v1231 = vld [vmem:[%s1230] sm:$0xf]
      %v1232 = vld [vmem:[%s1230 + $0x4] sm:$0xf]
      %s1233 = scalar_lea.vmem %s7, 1
      %v1234 = vld [vmem:[%s1233] sm:$0x1]
      %v1236 = vlaneseq
      %v1237 = vshrl.u32 %v1236, 7
      %v1238 = vsub.s32 0, %v1237
      %v1239 = vrot.slane %v1234, %v1238
      %v1243 = vunpack.c.l.b16 %v1231
      %v1244 = vunpack.c.l.b16 %v1232
      %v1245 = vpack.c.b16 %v1244, %v1243
      %1247 = vmatprep.subr.bf16.mxu0 0
      %1248 = vmatpush1.bf16.msra.mxu0 %v1245
      %1249 = vmatprep.subr.bf16.mxu0 0
      %1250 = vmatpush1.bf16.msra.mxu0 0
      %1251 = vmatprep.subr.bf16.mxu0 0
      %1252 = vmatpush1.bf16.msra.mxu0 0
      %1253 = vmatprep.subr.bf16.mxu0 0
      %1254 = vmatpush1.bf16.msra.mxu0 0
      %1255 = vmatprep.subr.bf16.mxu0 0
      %1256 = vmatpush1.bf16.msra.mxu0 0
      %1257 = vmatprep.subr.bf16.mxu0 0
      %1258 = vmatpush1.bf16.msra.mxu0 0
      %1259 = vmatprep.subr.bf16.mxu0 0
      %1260 = vmatpush1.bf16.msra.mxu0 0
      %1261 = vmatprep.subr.bf16.mxu0 0
      %1262 = vmatpush1.bf16.msra.mxu0 0
      %1263 = vmatprep.subr.bf16.mxu0 0
      %1264 = vmatpush1.bf16.msra.mxu0 0
      %1265 = vmatprep.subr.bf16.mxu0 0
      %1266 = vmatpush1.bf16.msra.mxu0 0
      %1267 = vmatprep.subr.bf16.mxu0 0
      %1268 = vmatpush1.bf16.msra.mxu0 0
      %1269 = vmatprep.subr.bf16.mxu0 0
      %1270 = vmatpush1.bf16.msra.mxu0 0
      %1271 = vmatprep.subr.bf16.mxu0 0
      %1272 = vmatpush1.bf16.msra.mxu0 0
      %1273 = vmatprep.subr.bf16.mxu0 0
      %1274 = vmatpush1.bf16.msra.mxu0 0
      %1275 = vmatprep.subr.bf16.mxu0 0
      %1276 = vmatpush1.bf16.msra.mxu0 0
      %1277 = vmatprep.subr.bf16.mxu0 0
      %1278 = vmatpush1.bf16.msra.mxu0 0
      %1279 = vmatprep.mubr.bf16.mxu0 0
      %1280 = vmatmul.mubr.bf16.gmra.mrb[0].mxu0 %v969
      %v1281 = vpop.f32.mrb[0].mxu0
      %v1282 = vadd.f32 %v1239, %v1281
      %v1283 = vpop.f32.mrb[0].mxu0
      %v1284 = vpop.f32.mrb[0].mxu0
      %v1285 = vadd.f32 %v1239, %v1284
      %v1286 = vpop.f32.mrb[0].mxu0
      %1287 = vmatprep.mubr.bf16.mxu0 0
      %1288 = vmatmul.mubr.bf16.gmra.mrb[0].mxu0 %v972
      %v1289 = vpop.f32.mrb[0].mxu0
      %v1290 = vadd.f32 %v1239, %v1289
      %v1291 = vpop.f32.mrb[0].mxu0
      %v1292 = vpop.f32.mrb[0].mxu0
      %v1293 = vadd.f32 %v1239, %v1292
      %v1294 = vpop.f32.mrb[0].mxu0
      %1295 = vmatprep.mubr.bf16.mxu0 0
      %1296 = vmatmul.mubr.bf16.gmra.mrb[0].mxu0 %v975
      %v1297 = vpop.f32.mrb[0].mxu0
      %v1298 = vadd.f32 %v1239, %v1297
      %v1299 = vpop.f32.mrb[0].mxu0
      %v1300 = vpop.f32.mrb[0].mxu0
      %v1301 = vadd.f32 %v1239, %v1300
      %v1302 = vpop.f32.mrb[0].mxu0
      %1303 = vmatprep.mubr.bf16.mxu0 0
      %1304 = vmatmul.mubr.bf16.gmra.mrb[0].mxu0 %v978
      %v1305 = vpop.f32.mrb[0].mxu0
      %v1306 = vadd.f32 %v1239, %v1305
      %v1307 = vpop.f32.mrb[0].mxu0
      %v1308 = vpop.f32.mrb[0].mxu0
      %v1309 = vadd.f32 %v1239, %v1308
      %v1310 = vpop.f32.mrb[0].mxu0
      %1311 = vdwg.mxu0
      %v1312 = vpack.c.bf16 %v1285, %v1282
      %v1313 = vpack.c.bf16 %v1293, %v1290
      %v1314 = vpack.c.bf16 %v1301, %v1298
      %v1315 = vpack.c.bf16 %v1309, %v1306
      %v1320 = vunpack.c.l.b16 %v1312
      %v1321 = vunpack.c.h.b16 %v1312
      %v1322 = vunpack.c.l.b16 %v1313
      %v1323 = vunpack.c.h.b16 %v1313
      %v1324 = vunpack.c.l.b16 %v1314
      %v1325 = vunpack.c.h.b16 %v1314
      %v1326 = vunpack.c.l.b16 %v1315
      %v1327 = vunpack.c.h.b16 %v1315
      %v1328 = vpack.c.b16 %v1320, %v1320
      %v1329 = vpack.c.b16 %v1321, %v1321
      %v1330 = vpack.c.b16 %v1322, %v1322
      %v1331 = vpack.c.b16 %v1323, %v1323
      %v1332 = vpack.c.b16 %v1324, %v1324
      %v1333 = vpack.c.b16 %v1325, %v1325
      %v1334 = vpack.c.b16 %v1326, %v1326
      %v1335 = vpack.c.b16 %v1327, %v1327
      %s1344 = scalar_lea.vmem %s474, 32
      %1345 = vst.msk [vmem:[%s1344] sm:$0xf] %vm1077, %v1328
      %1346 = vst.msk [vmem:[%s1344 + $0x4] sm:$0xf] %vm1077, %v1329
      %1347 = vst.msk [vmem:[%s1344 + $0x8] sm:$0xf] %vm1077, %v1330
      %1348 = vst.msk [vmem:[%s1344 + $0xc] sm:$0xf] %vm1077, %v1331
      %1349 = vst.msk [vmem:[%s1344 + $0x10] sm:$0xf] %vm1077, %v1332
      %1350 = vst.msk [vmem:[%s1344 + $0x14] sm:$0xf] %vm1077, %v1333
      %1351 = vst.msk [vmem:[%s1344 + $0x18] sm:$0xf] %vm1077, %v1334
      %1352 = vst.msk [vmem:[%s1344 + $0x1c] sm:$0xf] %vm1077, %v1335
      %s1353 = scalar_lea.vmem %s8, 8
      %v1354 = vld [vmem:[%s1353] sm:$0xf]
      %v1355 = vld [vmem:[%s1353 + $0x4] sm:$0xf]
      %s1356 = scalar_lea.vmem %s9, 1
      %v1357 = vld [vmem:[%s1356] sm:$0x1]
      %v1359 = vlaneseq
      %v1360 = vshrl.u32 %v1359, 7
      %v1361 = vsub.s32 0, %v1360
      %v1362 = vrot.slane %v1357, %v1361
      %v1366 = vunpack.c.l.b16 %v1354
      %v1367 = vunpack.c.l.b16 %v1355
      %v1368 = vpack.c.b16 %v1367, %v1366
      %1370 = vmatprep.subr.bf16.mxu0 0
      %1371 = vmatpush1.bf16.msra.mxu0 %v1368
      %1372 = vmatprep.subr.bf16.mxu0 0
      %1373 = vmatpush1.bf16.msra.mxu0 0
      %1374 = vmatprep.subr.bf16.mxu0 0
      %1375 = vmatpush1.bf16.msra.mxu0 0
      %1376 = vmatprep.subr.bf16.mxu0 0
      %1377 = vmatpush1.bf16.msra.mxu0 0
      %1378 = vmatprep.subr.bf16.mxu0 0
      %1379 = vmatpush1.bf16.msra.mxu0 0
      %1380 = vmatprep.subr.bf16.mxu0 0
      %1381 = vmatpush1.bf16.msra.mxu0 0
      %1382 = vmatprep.subr.bf16.mxu0 0
      %1383 = vmatpush1.bf16.msra.mxu0 0
      %1384 = vmatprep.subr.bf16.mxu0 0
      %1385 = vmatpush1.bf16.msra.mxu0 0
      %1386 = vmatprep.subr.bf16.mxu0 0
      %1387 = vmatpush1.bf16.msra.mxu0 0
      %1388 = vmatprep.subr.bf16.mxu0 0
      %1389 = vmatpush1.bf16.msra.mxu0 0
      %1390 = vmatprep.subr.bf16.mxu0 0
      %1391 = vmatpush1.bf16.msra.mxu0 0
      %1392 = vmatprep.subr.bf16.mxu0 0
      %1393 = vmatpush1.bf16.msra.mxu0 0
      %1394 = vmatprep.subr.bf16.mxu0 0
      %1395 = vmatpush1.bf16.msra.mxu0 0
      %1396 = vmatprep.subr.bf16.mxu0 0
      %1397 = vmatpush1.bf16.msra.mxu0 0
      %1398 = vmatprep.subr.bf16.mxu0 0
      %1399 = vmatpush1.bf16.msra.mxu0 0
      %1400 = vmatprep.subr.bf16.mxu0 0
      %1401 = vmatpush1.bf16.msra.mxu0 0
      %1402 = vmatprep.mubr.bf16.mxu0 0
      %1403 = vmatmul.mubr.bf16.gmra.mrb[0].mxu0 %v1114
      %v1404 = vpop.f32.mrb[0].mxu0
      %v1405 = vadd.f32 %v1362, %v1404
      %v1406 = vpop.f32.mrb[0].mxu0
      %v1407 = vpop.f32.mrb[0].mxu0
      %v1408 = vadd.f32 %v1362, %v1407
      %v1409 = vpop.f32.mrb[0].mxu0
      %1410 = vmatprep.mubr.bf16.mxu0 0
      %1411 = vmatmul.mubr.bf16.gmra.mrb[0].mxu0 %v1117
      %v1412 = vpop.f32.mrb[0].mxu0
      %v1413 = vadd.f32 %v1362, %v1412
      %v1414 = vpop.f32.mrb[0].mxu0
      %v1415 = vpop.f32.mrb[0].mxu0
      %v1416 = vadd.f32 %v1362, %v1415
      %v1417 = vpop.f32.mrb[0].mxu0
      %1418 = vmatprep.mubr.bf16.mxu0 0
      %1419 = vmatmul.mubr.bf16.gmra.mrb[0].mxu0 %v1120
      %v1420 = vpop.f32.mrb[0].mxu0
      %v1421 = vadd.f32 %v1362, %v1420
      %v1422 = vpop.f32.mrb[0].mxu0
      %v1423 = vpop.f32.mrb[0].mxu0
      %v1424 = vadd.f32 %v1362, %v1423
      %v1425 = vpop.f32.mrb[0].mxu0
      %1426 = vmatprep.mubr.bf16.mxu0 0
      %1427 = vmatmul.mubr.bf16.gmra.mrb[0].mxu0 %v1123
      %v1428 = vpop.f32.mrb[0].mxu0
      %v1429 = vadd.f32 %v1362, %v1428
      %v1430 = vpop.f32.mrb[0].mxu0
      %v1431 = vpop.f32.mrb[0].mxu0
      %v1432 = vadd.f32 %v1362, %v1431
      %v1433 = vpop.f32.mrb[0].mxu0
      %1434 = vdwg.mxu0
      %v1435 = vpack.c.bf16 %v1408, %v1405
      %v1436 = vpack.c.bf16 %v1416, %v1413
      %v1437 = vpack.c.bf16 %v1424, %v1421
      %v1438 = vpack.c.bf16 %v1432, %v1429
      %v1443 = vunpack.c.l.b16 %v1435
      %v1444 = vunpack.c.h.b16 %v1435
      %v1445 = vunpack.c.l.b16 %v1436
      %v1446 = vunpack.c.h.b16 %v1436
      %v1447 = vunpack.c.l.b16 %v1437
      %v1448 = vunpack.c.h.b16 %v1437
      %v1449 = vunpack.c.l.b16 %v1438
      %v1450 = vunpack.c.h.b16 %v1438
      %v1451 = vpack.c.b16 %v1443, %v1443
      %v1452 = vpack.c.b16 %v1444, %v1444
      %v1453 = vpack.c.b16 %v1445, %v1445
      %v1454 = vpack.c.b16 %v1446, %v1446
      %v1455 = vpack.c.b16 %v1447, %v1447
      %v1456 = vpack.c.b16 %v1448, %v1448
      %v1457 = vpack.c.b16 %v1449, %v1449
      %v1458 = vpack.c.b16 %v1450, %v1450
      %s1467 = scalar_lea.vmem %s484, 32
      %1468 = vst.msk [vmem:[%s1467] sm:$0xf] %vm1077, %v1451
      %1469 = vst.msk [vmem:[%s1467 + $0x4] sm:$0xf] %vm1077, %v1452
      %1470 = vst.msk [vmem:[%s1467 + $0x8] sm:$0xf] %vm1077, %v1453
      %1471 = vst.msk [vmem:[%s1467 + $0xc] sm:$0xf] %vm1077, %v1454
      %1472 = vst.msk [vmem:[%s1467 + $0x10] sm:$0xf] %vm1077, %v1455
      %1473 = vst.msk [vmem:[%s1467 + $0x14] sm:$0xf] %vm1077, %v1456
      %1474 = vst.msk [vmem:[%s1467 + $0x18] sm:$0xf] %vm1077, %v1457
      %1475 = vst.msk [vmem:[%s1467 + $0x1c] sm:$0xf] %vm1077, %v1458
      %s1476 = smul.u32 8, %s28
      %p1477 = scmp.lt.s32.totalorder %s27, 3
      %s1478 = scalar_select %p1477, %s27, 3
      %p1479 = scmp.lt.s32.totalorder %s1476, 7
      %s1480 = scalar_select %p1479, %s1476, 7
      %s1481 = smul.addr %s1478, 16
      %s1482 = sadd.s32 %s1480, %s1481
      %s1483 = smul.addr %s1482, 4
      %s1484 = scalar_lea.vmem %s10, %s1483
      %s1485 = smul.u32 8, %s28
      %p1486 = scmp.lt.s32.totalorder %s27, 3
      %s1487 = scalar_select %p1486, %s27, 3
      %p1488 = scmp.lt.s32.totalorder %s1485, 7
      %s1489 = scalar_select %p1488, %s1485, 7
      %s1490 = smul.addr %s1487, 16
      %s1491 = sadd.s32 %s1489, %s1490
      %s1492 = smul.addr %s1491, 4
      %s1493 = scalar_lea.vmem %s11, %s1492
      // Predicated region
      $region61: #{tpu_custom_call.1} parent=59 // pred_check
        %p1494 = pneg %p279
      $region62: #{tpu_custom_call.1} parent=59 // pred_check_branch
        %1496 = sbr.rel (%p1494) target = $region64
      $region63: #{tpu_custom_call.1} parent=59 // pred_region
        %s1497 = smul.u32 8, %s28
      $region64: #{tpu_custom_call.1} parent=59 // pred_fallthru
        _
      // Predicated region
      $region65: #{tpu_custom_call.1} parent=59 // pred_check
        %p1498 = pneg %p307
      $region66: #{tpu_custom_call.1} parent=59 // pred_check_branch
        %1500 = sbr.rel (%p1498) target = $region68
      $region67: #{tpu_custom_call.1} parent=59 // pred_region
        %s1501 = smul.u32 8, %s28
      $region68: #{tpu_custom_call.1} parent=59 // pred_fallthru
        _
    $region60: #{tpu_custom_call.1} parent=5 // pred_fallthru
      _
    %p1502 = scmp.le.s32.totalorder 2, %s18
    // Predicated region
    $region69: #{tpu_custom_call.1} parent=5 // pred_check
      %p1503 = pneg %p1502
    $region70: #{tpu_custom_call.1} parent=5 // pred_check_branch
      %1505 = sbr.rel (%p1503) target = $region72
    $region71: #{tpu_custom_call.1} parent=5 // pred_region
      %s1506 = ssub.s32 %s18, 2
      // Predicated region
      $region73: #{tpu_custom_call.1} parent=71 // pred_check
        %p1507 = pneg %p285
      $region74: #{tpu_custom_call.1} parent=71 // pred_check_branch
        %1509 = sbr.rel (%p1507) target = $region76
      $region75: #{tpu_custom_call.1} parent=71 // pred_region
        %s1510 = smul.u32 8, %s30
        %p1511 = scmp.lt.s32.totalorder %s29, 3
        %s1512 = scalar_select %p1511, %s29, 3
        %p1513 = scmp.lt.s32.totalorder %s1510, 7
        %s1514 = scalar_select %p1513, %s1510, 7
        %s1515 = smul.addr %s1512, 16
        %s1516 = sadd.s32 %s1514, %s1515
        %s1517 = smul.addr %s1516, 4
        %s1518 = scalar_lea.vmem %s10, %s1517
      $region76: #{tpu_custom_call.1} parent=71 // pred_fallthru
        _
      // Predicated region
      $region77: #{tpu_custom_call.1} parent=71 // pred_check
        %p1519 = pneg %p313
      $region78: #{tpu_custom_call.1} parent=71 // pred_check_branch
        %1521 = sbr.rel (%p1519) target = $region80
      $region79: #{tpu_custom_call.1} parent=71 // pred_region
        %s1522 = smul.u32 8, %s30
        %p1523 = scmp.lt.s32.totalorder %s29, 3
        %s1524 = scalar_select %p1523, %s29, 3
        %p1525 = scmp.lt.s32.totalorder %s1522, 7
        %s1526 = scalar_select %p1525, %s1522, 7
        %s1527 = smul.addr %s1524, 16
        %s1528 = sadd.s32 %s1526, %s1527
        %s1529 = smul.addr %s1528, 4
        %s1530 = scalar_lea.vmem %s11, %s1529
      $region80: #{tpu_custom_call.1} parent=71 // pred_fallthru
        _
    $region72: #{tpu_custom_call.1} parent=5 // pred_fallthru
      _
  $region6: #{tpu_custom_call.1} parent=0 // loop_footer
    %s22 = sadd.s32 1, %s18
  $region7: #{tpu_custom_call.1} parent=0 // loop_footer_branch
    %17 = sbr.rel target = $region3
  $region8: #{tpu_custom_call.1} parent=0 // loop_exit
    _

</llo_original>
